<compile_context>
chip_gen: v7x
topology: tpu7x:2x2x1
jax: 0.10.0
libtpu: 0.0.40
codegen_flags: <defaults>
</compile_context>

<pallas_src>
import math
import functools

import jax
import jax.numpy as jnp
from jax import lax
from jax.experimental import pallas as pl
from jax.experimental.pallas import tpu as pltpu


def _round8(n):
    return ((n + 7) // 8) * 8


# -----------------------------------------------------------------------------
# Parameter packing: one f32 slab [Rtot, Cmax]; static (row, nrows, ncols) offsets
# are closed over by the kernel so slicing inside the kernel is fully static.
# -----------------------------------------------------------------------------
def pack_params(params, F, W, S, Dl):
    We = params["W_edge"]                                       # (2F+S, F): [src|s_f|dst]
    we_sd = jnp.concatenate([We[:F], We[F + S:]], axis=1)       # (F, 2F)  fused src/dst proj
    we_sp = We[F:F + S]                                         # (S, F)
    Wel = params["W_edge_lang"]                                 # (2W, Dl): [src|dst]
    wel = jnp.concatenate([Wel[:W], Wel[W:]], axis=1)           # (W, 2Dl)
    wn = params["W_node"]                                       # (2F, F)
    wnl = params["W_node_lang"]                                 # (2W, W)

    # Vector block: biases + attention row-vectors + scalar attn biases, one row each.
    Cvec = max(F, W, Dl, 2)

    def row(v):
        v = jnp.asarray(v, jnp.float32).reshape(-1)
        return jnp.pad(v, (0, Cvec - v.shape[0]))

    vec = jnp.stack([
        row(params["b_edge"]),                                  # 0: (F,)
        row(params["b_edge_lang"]),                             # 1: (Dl,)
        row(params["b_node"]),                                  # 2: (F,)
        row(params["b_node_lang"]),                             # 3: (W,)
        row(params["W_attn"][:, 0]),                            # 4: (F,)
        row(params["W_attn_lang"][:, 0]),                       # 5: (Dl,)
        row(jnp.stack([params["b_attn"][0],
                       params["b_attn_lang"][0]])),             # 6: [ba, bal]
        row(jnp.zeros((1,), jnp.float32)),                      # 7: pad
    ], axis=0)                                                  # (8, Cvec)

    names = ["we_sd", "we_sp", "wel", "wn", "wnl", "vec"]
    blocks = [we_sd, we_sp, wel, wn, wnl, vec]
    Cmax = max(int(b.shape[1]) for b in blocks)

    offs, rows, r = {}, [], 0
    for name, b in zip(names, blocks):
        nr, nc = int(b.shape[0]), int(b.shape[1])
        nrp = _round8(nr)
        offs[name] = (r, nr, nc)
        rows.append(jnp.pad(b.astype(jnp.float32),
                            ((0, nrp - nr), (0, Cmax - nc))))
        r += nrp
    slab = jnp.concatenate(rows, axis=0)                        # (Rtot, Cmax)
    return slab, offs


# -----------------------------------------------------------------------------
# Fused Pallas kernel: one scene graph per grid step (batch axis is "parallel").
# -----------------------------------------------------------------------------
def make_grnn_kernel(N, F, W, S, Dl, offs):
    f32 = jnp.float32

    def kernel(nf_ref, wv_ref, sp_ref, slab_ref, out_f_ref, out_l_ref):
        dot = lambda a, b: jnp.dot(a, b, preferred_element_type=f32)
        relu = lambda x: jnp.maximum(x, 0.0)
        leaky = lambda x: jnp.where(x > 0, x, 0.2 * x)

        def blk(name):
            r, nr, nc = offs[name]
            return slab_ref[r:r + nr, :nc]                      # static slice -> free

        nf = nf_ref[...]                                        # (N, F)
        wv = wv_ref[...]                                        # (N, W)

        we_sd = blk("we_sd")                                    # (F, 2F)
        we_sp = blk("we_sp")                                    # (S, F)
        wel = blk("wel")                                        # (W, 2Dl)
        wn = blk("wn")                                          # (2F, F)
        wnl = blk("wnl")                                        # (2W, W)
        vec = blk("vec")                                        # (8, Cvec)
        be, bel = vec[0:1, :F], vec[1:2, :Dl]
        bn, bnl = vec[2:3, :F], vec[3:4, :W]
        wa, wal = vec[4:5, :F], vec[5:6, :Dl]
        ba, bal = vec[6:7, 0:1], vec[6:7, 1:2]

        # --- edge MLP: fused src/dst projections + spatial projection (src-major) ---
        proj = dot(nf, we_sd)                                   # (N, 2F)
        sp2 = sp_ref[...].reshape(N * N, S)                     # row e = src*N + dst (view)
        e_sp3 = dot(sp2, we_sp).reshape(N, N, F)                # (N_src, N_dst, F)
        e_f3 = relu(proj[:, None, :F] + proj[None, :, F:]       # gather by broadcast
                    + e_sp3 + be[None, :, :])                   # (N_src, N_dst, F)

        projl = dot(wv, wel)                                    # (N, 2Dl)
        e_fl3 = relu(projl[:, None, :Dl] + projl[None, :, Dl:]
                     + bel[None, :, :])                         # (N_src, N_dst, Dl)

        # --- attention + per-dst masked softmax in (N_src, N_dst) layout ---
        rows_i = lax.broadcasted_iota(jnp.int32, (N, N), 0)
        cols_i = lax.broadcasted_iota(jnp.int32, (N, N), 1)
        diag = rows_i == cols_i                                 # self-edges (masked out)

        def softmax_over_src(scores):                           # softmax over axis 0 (src)
            scores = jnp.where(diag, -1e30, scores)
            m = jnp.max(scores, axis=0, keepdims=True)          # per-dst max
            ea = jnp.exp(scores - m)
            den = jnp.sum(ea, axis=0, keepdims=True)
            return ea * pl.reciprocal(den, approx=True)         # EUP reciprocal

        a = leaky(jnp.sum(e_f3 * wa[None, :, :], axis=-1) + ba)    # (N_src, N_dst)
        al = leaky(jnp.sum(e_fl3 * wal[None, :, :], axis=-1) + bal)
        alpha = softmax_over_src(a)
        alpha_l = softmax_over_src(al)

        # --- weighted per-dst reduction: sum over src = leading axis (VPU adds) ---
        z_f = jnp.sum(alpha[:, :, None] * (nf[:, None, :] + e_f3), axis=0)   # (N, F)
        z_fl = jnp.sum(alpha_l[:, :, None] * wv[:, None, :], axis=0)         # (N, W)

        # --- node MLP: fused concat -> single MXU push each ---
        out_f_ref[...] = relu(dot(jnp.concatenate([nf, z_f], axis=-1), wn) + bn)
        out_l_ref[...] = relu(dot(jnp.concatenate([wv, z_fl], axis=-1), wnl) + bnl)

    return kernel


# -----------------------------------------------------------------------------
# Wrapper: batched graphs, grid over the batch axis.
# -----------------------------------------------------------------------------
def grnn_forward(feat, word2vec, spatial_feat, params):
    """feat (B,N,F) or (N,F); word2vec (B,N,W); spatial_feat (B,N,N,S) indexed [b,src,dst,:]."""
    squeeze = feat.ndim == 2
    if squeeze:
        feat, word2vec, spatial_feat = feat[None], word2vec[None], spatial_feat[None]

    B, N, F = feat.shape
    W = word2vec.shape[-1]
    S = spatial_feat.shape[-1]
    Dl = params["W_edge_lang"].shape[1]

    slab, offs = pack_params(params, F, W, S, Dl)
    Rtot, Cmax = slab.shape
    kernel = make_grnn_kernel(N, F, W, S, Dl, offs)

    out_f, out_l = pl.pallas_call(
        kernel,
        grid=(B,),
        in_specs=[
            pl.BlockSpec((None, N, F), lambda b: (b, 0, 0)),         # one graph / step
            pl.BlockSpec((None, N, W), lambda b: (b, 0, 0)),
            pl.BlockSpec((None, N, N, S), lambda b: (b, 0, 0, 0)),
            pl.BlockSpec((Rtot, Cmax), lambda b: (0, 0)),            # shared param slab
        ],
        out_specs=(
            pl.BlockSpec((None, N, F), lambda b: (b, 0, 0)),
            pl.BlockSpec((None, N, W), lambda b: (b, 0, 0)),
        ),
        out_shape=(jax.ShapeDtypeStruct((B, N, F), jnp.float32),
                   jax.ShapeDtypeStruct((B, N, W), jnp.float32)),
        compiler_params=pltpu.CompilerParams(
            dimension_semantics=("parallel",)),                      # shard batch on v7x cores
    )(feat.astype(jnp.float32), word2vec.astype(jnp.float32),
      spatial_feat.astype(jnp.float32), slab)

    if squeeze:
        out_f, out_l = out_f[0], out_l[0]
    return out_f, out_l


# -----------------------------------------------------------------------------
# Deterministic parameter init (PyTorch nn.Linear default: U(-1/sqrt(fan_in), +)).
# -----------------------------------------------------------------------------
def init_params(key, F, W, S, Dl):
    def lin(k, fan_in, fan_out):
        kw, kb = jax.random.split(k)
        bound = 1.0 / math.sqrt(fan_in)
        w = jax.random.uniform(kw, (fan_in, fan_out), jnp.float32, -bound, bound)
        b = jax.random.uniform(kb, (fan_out,), jnp.float32, -bound, bound)
        return w, b

    ks = jax.random.split(key, 6)
    W_edge, b_edge = lin(ks[0], 2 * F + S, F)          # CONFIG.G_E_L_S  = [2F+S, F]
    W_edge_lang, b_edge_lang = lin(ks[1], 2 * W, Dl)   # CONFIG.G_E_L_S2 = [2W, Dl]
    W_attn, b_attn = lin(ks[2], F, 1)                  # CONFIG.G_A_L_S  = [F, 1]
    W_attn_lang, b_attn_lang = lin(ks[3], Dl, 1)       # CONFIG.G_A_L_S2 = [Dl, 1]
    W_node, b_node = lin(ks[4], 2 * F, F)              # CONFIG.G_N_L_S  = [2F, F]
    W_node_lang, b_node_lang = lin(ks[5], 2 * W, W)    # CONFIG.G_N_L_S2 = [2W, W]
    return dict(W_edge=W_edge, b_edge=b_edge,
                W_edge_lang=W_edge_lang, b_edge_lang=b_edge_lang,
                W_attn=W_attn, b_attn=b_attn,
                W_attn_lang=W_attn_lang, b_attn_lang=b_attn_lang,
                W_node=W_node, b_node=b_node,
                W_node_lang=W_node_lang, b_node_lang=b_node_lang)


# -----------------------------------------------------------------------------
# Pure-JAX reference mirroring the DGL mailbox semantics (single graph).
# -----------------------------------------------------------------------------
def grnn_reference(nf, wv, s_sd, p):
    N = nf.shape[0]
    relu = lambda x: jnp.maximum(x, 0.0)
    leaky = lambda x: jnp.where(x > 0, x, 0.2 * x)
    outs_f, outs_l = [], []
    for j in range(N):
        srcs = jnp.array([i for i in range(N) if i != j])
        src_nf, src_wv = nf[srcs], wv[srcs]
        sp = s_sd[srcs, j]
        dst_nf = jnp.broadcast_to(nf[j], src_nf.shape)
        dst_wv = jnp.broadcast_to(wv[j], src_wv.shape)
        e_f = relu(jnp.concatenate([src_nf, sp, dst_nf], 1) @ p["W_edge"] + p["b_edge"])
        e_fl = relu(jnp.concatenate([src_wv, dst_wv], 1) @ p["W_edge_lang"] + p["b_edge_lang"])
        a = leaky(e_f @ p["W_attn"] + p["b_attn"])
        al = leaky(e_fl @ p["W_attn_lang"] + p["b_attn_lang"])
        alpha = jax.nn.softmax(a, axis=0)
        alpha_l = jax.nn.softmax(al, axis=0)
        z_f = jnp.sum(alpha * (src_nf + e_f), axis=0)
        z_fl = jnp.sum(alpha_l * src_wv, axis=0)
        outs_f.append(relu(jnp.concatenate([nf[j], z_f]) @ p["W_node"] + p["b_node"]))
        outs_l.append(relu(jnp.concatenate([wv[j], z_fl]) @ p["W_node_lang"] + p["b_node_lang"]))
    return jnp.stack(outs_f), jnp.stack(outs_l)


if __name__ == "__main__":
    # Small synthetic batch of scene graphs: B graphs, N nodes each, dense complete
    # directed graph (no self loops).
    B, N, F, W, S, Dl = 2, 8, 32, 16, 16, 16

    key = jax.random.PRNGKey(0)
    k_feat, k_wv, k_sp, k_param = jax.random.split(key, 4)
    feat = jax.random.normal(k_feat, (B, N, F), jnp.float32)            # ndata['n_f']
    word2vec = jax.random.normal(k_wv, (B, N, W), jnp.float32)          # ndata['word2vec']
    spatial_feat = jax.random.normal(k_sp, (B, N, N, S), jnp.float32)   # edata['s_f'] [src,dst,:]

    params = init_params(k_param, F, W, S, Dl)

    new_n_f, new_n_f_lang = grnn_forward(feat, word2vec, spatial_feat, params)
    jax.block_until_ready((new_n_f, new_n_f_lang))

    for b in range(B):
        ref_f, ref_l = grnn_reference(feat[b], word2vec[b], spatial_feat[b], params)
        assert jnp.allclose(new_n_f[b], ref_f, atol=3e-3, rtol=3e-3)
        assert jnp.allclose(new_n_f_lang[b], ref_l, atol=3e-3, rtol=3e-3)

    print("KERNEL_OK")
</pallas_src>

<mosaic_0001>
module attributes {stable_mosaic.version = 11 : i64} {
  func.func @kernel(%arg0: i32, %arg1: memref<1x8x32xf32, #tpu.memory_space<vmem>>, %arg2: memref<1x8x16xf32, #tpu.memory_space<vmem>>, %arg3: memref<1x8x8x16xf32, #tpu.memory_space<vmem>>, %arg4: memref<168x64xf32, #tpu.memory_space<vmem>>, %arg5: memref<1x8x32xf32, #tpu.memory_space<vmem>>, %arg6: memref<1x8x16xf32, #tpu.memory_space<vmem>>) attributes {dimension_semantics = [#tpu.dimension_semantics<parallel>], iteration_bounds = array<i64: 2>, scalar_prefetch = 0 : i64, scratch_operands = 0 : i64, tpu.core_type = #tpu.core_type<tc>, window_params = [{transform_indices = @transform_0, window_bounds = array<i64: 1, 8, 32>}, {transform_indices = @transform_1, window_bounds = array<i64: 1, 8, 16>}, {transform_indices = @transform_2, window_bounds = array<i64: 1, 8, 8, 16>}, {pipeline_mode = #tpu.pipeline_mode<synchronous>, transform_indices = @transform_3, window_bounds = array<i64: 168, 64>}, {transform_indices = @transform_4, window_bounds = array<i64: 1, 8, 32>}, {transform_indices = @transform_5, window_bounds = array<i64: 1, 8, 16>}]} {
    %c0 = arith.constant 0 : index
    %c0_0 = arith.constant 0 : index
    %c0_1 = arith.constant 0 : index
    %0 = vector.load %arg1[%c0, %c0_0, %c0_1] : memref<1x8x32xf32, #tpu.memory_space<vmem>>, vector<1x8x32xf32>
    %1 = vector.shape_cast %0 : vector<1x8x32xf32> to vector<8x32xf32>
    %c0_2 = arith.constant 0 : index
    %c0_3 = arith.constant 0 : index
    %c0_4 = arith.constant 0 : index
    %2 = vector.load %arg2[%c0_2, %c0_3, %c0_4] : memref<1x8x16xf32, #tpu.memory_space<vmem>>, vector<1x8x16xf32>
    %3 = vector.shape_cast %2 : vector<1x8x16xf32> to vector<8x16xf32>
    %c0_5 = arith.constant 0 : index
    %c0_6 = arith.constant 0 : index
    %4 = vector.load %arg4[%c0_5, %c0_6] : memref<168x64xf32, #tpu.memory_space<vmem>>, vector<32x64xf32>
    %c32 = arith.constant 32 : index
    %c0_7 = arith.constant 0 : index
    %5 = vector.load %arg4[%c32, %c0_7] : memref<168x64xf32, #tpu.memory_space<vmem>>, vector<16x32xf32>
    %c48 = arith.constant 48 : index
    %c0_8 = arith.constant 0 : index
    %6 = vector.load %arg4[%c48, %c0_8] : memref<168x64xf32, #tpu.memory_space<vmem>>, vector<16x32xf32>
    %c64 = arith.constant 64 : index
    %c0_9 = arith.constant 0 : index
    %7 = vector.load %arg4[%c64, %c0_9] : memref<168x64xf32, #tpu.memory_space<vmem>>, vector<64x32xf32>
    %c128 = arith.constant 128 : index
    %c0_10 = arith.constant 0 : index
    %8 = vector.load %arg4[%c128, %c0_10] : memref<168x64xf32, #tpu.memory_space<vmem>>, vector<32x16xf32>
    %c160 = arith.constant 160 : index
    %c0_11 = arith.constant 0 : index
    %9 = vector.load %arg4[%c160, %c0_11] : memref<168x64xf32, #tpu.memory_space<vmem>>, vector<8x32xf32>
    %10 = vector.extract_strided_slice %9 {offsets = [0, 0], sizes = [1, 32], strides = [1, 1]} : vector<8x32xf32> to vector<1x32xf32>
    %11 = vector.extract_strided_slice %9 {offsets = [1, 0], sizes = [1, 16], strides = [1, 1]} : vector<8x32xf32> to vector<1x16xf32>
    %12 = vector.extract_strided_slice %9 {offsets = [2, 0], sizes = [1, 32], strides = [1, 1]} : vector<8x32xf32> to vector<1x32xf32>
    %13 = vector.extract_strided_slice %9 {offsets = [3, 0], sizes = [1, 16], strides = [1, 1]} : vector<8x32xf32> to vector<1x16xf32>
    %14 = vector.extract_strided_slice %9 {offsets = [4, 0], sizes = [1, 32], strides = [1, 1]} : vector<8x32xf32> to vector<1x32xf32>
    %15 = vector.extract_strided_slice %9 {offsets = [5, 0], sizes = [1, 16], strides = [1, 1]} : vector<8x32xf32> to vector<1x16xf32>
    %16 = vector.extract_strided_slice %9 {offsets = [6, 0], sizes = [1, 1], strides = [1, 1]} : vector<8x32xf32> to vector<1x1xf32>
    %17 = vector.extract_strided_slice %9 {offsets = [6, 1], sizes = [1, 1], strides = [1, 1]} : vector<8x32xf32> to vector<1x1xf32>
    %cst = arith.constant dense<0.000000e+00> : vector<8x64xf32>
    %18 = tpu.matmul %1, %4, %cst {dimension_numbers = #tpu.dot_dimension_numbers<[1], [0], [0], [1], [0, 0, 1, 1], [], []>} : vector<8x32xf32>, vector<32x64xf32>, vector<8x64xf32> -> vector<8x64xf32>
    %c0_12 = arith.constant 0 : index
    %c0_13 = arith.constant 0 : index
    %c0_14 = arith.constant 0 : index
    %c0_15 = arith.constant 0 : index
    %19 = vector.load %arg3[%c0_12, %c0_13, %c0_14, %c0_15] : memref<1x8x8x16xf32, #tpu.memory_space<vmem>>, vector<1x8x8x16xf32>
    %20 = vector.shape_cast %19 : vector<1x8x8x16xf32> to vector<8x8x16xf32>
    %21 = vector.shape_cast %20 : vector<8x8x16xf32> to vector<64x16xf32>
    %cst_16 = arith.constant dense<0.000000e+00> : vector<64x32xf32>
    %22 = tpu.matmul %21, %5, %cst_16 {dimension_numbers = #tpu.dot_dimension_numbers<[1], [0], [0], [1], [0, 0, 1, 1], [], []>} : vector<64x16xf32>, vector<16x32xf32>, vector<64x32xf32> -> vector<64x32xf32>
    %23 = vector.shape_cast %22 : vector<64x32xf32> to vector<8x8x32xf32>
    %24 = vector.extract_strided_slice %18 {offsets = [0, 0], sizes = [8, 32], strides = [1, 1]} : vector<8x64xf32> to vector<8x32xf32>
    %25 = vector.shape_cast %24 : vector<8x32xf32> to vector<8x1x32xf32>
    %26 = vector.extract_strided_slice %18 {offsets = [0, 32], sizes = [8, 32], strides = [1, 1]} : vector<8x64xf32> to vector<8x32xf32>
    %27 = vector.shape_cast %26 : vector<8x32xf32> to vector<1x8x32xf32>
    %28 = vector.broadcast %25 : vector<8x1x32xf32> to vector<8x8x32xf32>
    %29 = vector.broadcast %27 : vector<1x8x32xf32> to vector<8x8x32xf32>
    %30 = arith.addf %28, %29 : vector<8x8x32xf32>
    %31 = arith.addf %30, %23 : vector<8x8x32xf32>
    %32 = vector.shape_cast %10 : vector<1x32xf32> to vector<1x1x32xf32>
    %33 = vector.broadcast %32 : vector<1x1x32xf32> to vector<8x8x32xf32>
    %34 = arith.addf %31, %33 : vector<8x8x32xf32>
    %cst_17 = arith.constant 0.000000e+00 : f32
    %35 = vector.broadcast %cst_17 : f32 to vector<8x8x32xf32>
    %36 = arith.maximumf %34, %35 : vector<8x8x32xf32>
    %cst_18 = arith.constant dense<0.000000e+00> : vector<8x32xf32>
    %37 = tpu.matmul %3, %6, %cst_18 {dimension_numbers = #tpu.dot_dimension_numbers<[1], [0], [0], [1], [0, 0, 1, 1], [], []>} : vector<8x16xf32>, vector<16x32xf32>, vector<8x32xf32> -> vector<8x32xf32>
    %38 = vector.extract_strided_slice %37 {offsets = [0, 0], sizes = [8, 16], strides = [1, 1]} : vector<8x32xf32> to vector<8x16xf32>
    %39 = vector.shape_cast %38 : vector<8x16xf32> to vector<8x1x16xf32>
    %40 = vector.extract_strided_slice %37 {offsets = [0, 16], sizes = [8, 16], strides = [1, 1]} : vector<8x32xf32> to vector<8x16xf32>
    %41 = vector.shape_cast %40 : vector<8x16xf32> to vector<1x8x16xf32>
    %42 = vector.broadcast %39 : vector<8x1x16xf32> to vector<8x8x16xf32>
    %43 = vector.broadcast %41 : vector<1x8x16xf32> to vector<8x8x16xf32>
    %44 = arith.addf %42, %43 : vector<8x8x16xf32>
    %45 = vector.shape_cast %11 : vector<1x16xf32> to vector<1x1x16xf32>
    %46 = vector.broadcast %45 : vector<1x1x16xf32> to vector<8x8x16xf32>
    %47 = arith.addf %44, %46 : vector<8x8x16xf32>
    %cst_19 = arith.constant 0.000000e+00 : f32
    %48 = vector.broadcast %cst_19 : f32 to vector<8x8x16xf32>
    %49 = arith.maximumf %47, %48 : vector<8x8x16xf32>
    %50 = tpu.iota {dimensions = array<i32: 0>} : vector<8x8xi32>
    %51 = tpu.iota {dimensions = array<i32: 1>} : vector<8x8xi32>
    %52 = arith.cmpi eq, %50, %51 : vector<8x8xi32>
    %53 = vector.shape_cast %14 : vector<1x32xf32> to vector<1x1x32xf32>
    %54 = vector.broadcast %53 : vector<1x1x32xf32> to vector<8x8x32xf32>
    %55 = arith.mulf %36, %54 : vector<8x8x32xf32>
    %cst_20 = arith.constant dense<0.000000e+00> : vector<8x8xf32>
    %56 = vector.multi_reduction <add>, %55, %cst_20 [2] : vector<8x8x32xf32> to vector<8x8xf32>
    %57 = vector.broadcast %16 : vector<1x1xf32> to vector<8x8xf32>
    %58 = arith.addf %56, %57 : vector<8x8xf32>
    %cst_21 = arith.constant 0.000000e+00 : f32
    %59 = vector.broadcast %cst_21 : f32 to vector<8x8xf32>
    %60 = arith.cmpf ogt, %58, %59 : vector<8x8xf32>
    %cst_22 = arith.constant 2.000000e-01 : f32
    %61 = vector.broadcast %cst_22 : f32 to vector<8x8xf32>
    %62 = arith.mulf %61, %58 : vector<8x8xf32>
    %63 = arith.select %60, %58, %62 : vector<8x8xi1>, vector<8x8xf32>
    %64 = vector.shape_cast %15 : vector<1x16xf32> to vector<1x1x16xf32>
    %65 = vector.broadcast %64 : vector<1x1x16xf32> to vector<8x8x16xf32>
    %66 = arith.mulf %49, %65 : vector<8x8x16xf32>
    %cst_23 = arith.constant dense<0.000000e+00> : vector<8x8xf32>
    %67 = vector.multi_reduction <add>, %66, %cst_23 [2] : vector<8x8x16xf32> to vector<8x8xf32>
    %68 = vector.broadcast %17 : vector<1x1xf32> to vector<8x8xf32>
    %69 = arith.addf %67, %68 : vector<8x8xf32>
    %cst_24 = arith.constant 0.000000e+00 : f32
    %70 = vector.broadcast %cst_24 : f32 to vector<8x8xf32>
    %71 = arith.cmpf ogt, %69, %70 : vector<8x8xf32>
    %cst_25 = arith.constant 2.000000e-01 : f32
    %72 = vector.broadcast %cst_25 : f32 to vector<8x8xf32>
    %73 = arith.mulf %72, %69 : vector<8x8xf32>
    %74 = arith.select %71, %69, %73 : vector<8x8xi1>, vector<8x8xf32>
    %cst_26 = arith.constant -1.000000e+30 : f32
    %75 = vector.broadcast %cst_26 : f32 to vector<8x8xf32>
    %76 = arith.select %52, %75, %63 : vector<8x8xi1>, vector<8x8xf32>
    %cst_27 = arith.constant dense<0xFF800000> : vector<8xf32>
    %77 = vector.multi_reduction <maximumf>, %76, %cst_27 [0] : vector<8x8xf32> to vector<8xf32>
    %78 = vector.shape_cast %77 : vector<8xf32> to vector<1x8xf32>
    %79 = vector.broadcast %78 : vector<1x8xf32> to vector<8x8xf32>
    %80 = arith.subf %76, %79 : vector<8x8xf32>
    %81 = math.exp %80 : vector<8x8xf32>
    %cst_28 = arith.constant dense<0.000000e+00> : vector<8xf32>
    %82 = vector.multi_reduction <add>, %81, %cst_28 [0] : vector<8x8xf32> to vector<8xf32>
    %83 = vector.shape_cast %82 : vector<8xf32> to vector<1x8xf32>
    %84 = tpu.reciprocal %83 {approx = true} : vector<1x8xf32> -> vector<1x8xf32>
    %85 = vector.broadcast %84 : vector<1x8xf32> to vector<8x8xf32>
    %86 = arith.mulf %81, %85 : vector<8x8xf32>
    %cst_29 = arith.constant -1.000000e+30 : f32
    %87 = vector.broadcast %cst_29 : f32 to vector<8x8xf32>
    %88 = arith.select %52, %87, %74 : vector<8x8xi1>, vector<8x8xf32>
    %cst_30 = arith.constant dense<0xFF800000> : vector<8xf32>
    %89 = vector.multi_reduction <maximumf>, %88, %cst_30 [0] : vector<8x8xf32> to vector<8xf32>
    %90 = vector.shape_cast %89 : vector<8xf32> to vector<1x8xf32>
    %91 = vector.broadcast %90 : vector<1x8xf32> to vector<8x8xf32>
    %92 = arith.subf %88, %91 : vector<8x8xf32>
    %93 = math.exp %92 : vector<8x8xf32>
    %cst_31 = arith.constant dense<0.000000e+00> : vector<8xf32>
    %94 = vector.multi_reduction <add>, %93, %cst_31 [0] : vector<8x8xf32> to vector<8xf32>
    %95 = vector.shape_cast %94 : vector<8xf32> to vector<1x8xf32>
    %96 = tpu.reciprocal %95 {approx = true} : vector<1x8xf32> -> vector<1x8xf32>
    %97 = vector.broadcast %96 : vector<1x8xf32> to vector<8x8xf32>
    %98 = arith.mulf %93, %97 : vector<8x8xf32>
    %99 = vector.shape_cast %86 : vector<8x8xf32> to vector<8x8x1xf32>
    %100 = vector.shape_cast %1 : vector<8x32xf32> to vector<8x1x32xf32>
    %101 = vector.broadcast %100 : vector<8x1x32xf32> to vector<8x8x32xf32>
    %102 = arith.addf %101, %36 : vector<8x8x32xf32>
    %103 = vector.broadcast %99 : vector<8x8x1xf32> to vector<8x8x32xf32>
    %104 = arith.mulf %103, %102 : vector<8x8x32xf32>
    %cst_32 = arith.constant dense<0.000000e+00> : vector<8x32xf32>
    %105 = vector.multi_reduction <add>, %104, %cst_32 [0] : vector<8x8x32xf32> to vector<8x32xf32>
    %106 = vector.shape_cast %98 : vector<8x8xf32> to vector<8x8x1xf32>
    %107 = vector.shape_cast %3 : vector<8x16xf32> to vector<8x1x16xf32>
    %108 = vector.broadcast %106 : vector<8x8x1xf32> to vector<8x8x16xf32>
    %109 = vector.broadcast %107 : vector<8x1x16xf32> to vector<8x8x16xf32>
    %110 = arith.mulf %108, %109 : vector<8x8x16xf32>
    %cst_33 = arith.constant dense<0.000000e+00> : vector<8x16xf32>
    %111 = vector.multi_reduction <add>, %110, %cst_33 [0] : vector<8x8x16xf32> to vector<8x16xf32>
    %112 = tpu.concatenate %1, %105 in 1 : vector<8x32xf32>, vector<8x32xf32> -> vector<8x64xf32>
    %cst_34 = arith.constant dense<0.000000e+00> : vector<8x32xf32>
    %113 = tpu.matmul %112, %7, %cst_34 {dimension_numbers = #tpu.dot_dimension_numbers<[1], [0], [0], [1], [0, 0, 1, 1], [], []>} : vector<8x64xf32>, vector<64x32xf32>, vector<8x32xf32> -> vector<8x32xf32>
    %114 = vector.broadcast %12 : vector<1x32xf32> to vector<8x32xf32>
    %115 = arith.addf %113, %114 : vector<8x32xf32>
    %cst_35 = arith.constant 0.000000e+00 : f32
    %116 = vector.broadcast %cst_35 : f32 to vector<8x32xf32>
    %117 = arith.maximumf %115, %116 : vector<8x32xf32>
    %c0_36 = arith.constant 0 : index
    %c0_37 = arith.constant 0 : index
    %c0_38 = arith.constant 0 : index
    %118 = vector.load %arg5[%c0_36, %c0_37, %c0_38] : memref<1x8x32xf32, #tpu.memory_space<vmem>>, vector<1x8x32xf32>
    %119 = vector.shape_cast %118 : vector<1x8x32xf32> to vector<8x32xf32>
    %120 = vector.shape_cast %117 : vector<8x32xf32> to vector<1x8x32xf32>
    tpu.vector_store %arg5[%c0_36, %c0_37, %c0_38], %120 {strides = array<i32>} : memref<1x8x32xf32, #tpu.memory_space<vmem>>, vector<1x8x32xf32>,
    %121 = tpu.concatenate %3, %111 in 1 : vector<8x16xf32>, vector<8x16xf32> -> vector<8x32xf32>
    %cst_39 = arith.constant dense<0.000000e+00> : vector<8x16xf32>
    %122 = tpu.matmul %121, %8, %cst_39 {dimension_numbers = #tpu.dot_dimension_numbers<[1], [0], [0], [1], [0, 0, 1, 1], [], []>} : vector<8x32xf32>, vector<32x16xf32>, vector<8x16xf32> -> vector<8x16xf32>
    %123 = vector.broadcast %13 : vector<1x16xf32> to vector<8x16xf32>
    %124 = arith.addf %122, %123 : vector<8x16xf32>
    %cst_40 = arith.constant 0.000000e+00 : f32
    %125 = vector.broadcast %cst_40 : f32 to vector<8x16xf32>
    %126 = arith.maximumf %124, %125 : vector<8x16xf32>
    %c0_41 = arith.constant 0 : index
    %c0_42 = arith.constant 0 : index
    %c0_43 = arith.constant 0 : index
    %127 = vector.load %arg6[%c0_41, %c0_42, %c0_43] : memref<1x8x16xf32, #tpu.memory_space<vmem>>, vector<1x8x16xf32>
    %128 = vector.shape_cast %127 : vector<1x8x16xf32> to vector<8x16xf32>
    %129 = vector.shape_cast %126 : vector<8x16xf32> to vector<1x8x16xf32>
    tpu.vector_store %arg6[%c0_41, %c0_42, %c0_43], %129 {strides = array<i32>} : memref<1x8x16xf32, #tpu.memory_space<vmem>>, vector<1x8x16xf32>,
    return
  }
  func.func @transform_0(%arg0: i32) -> (i32, i32, i32) {
    %c0_i32 = arith.constant 0 : i32
    %c0_i32_0 = arith.constant 0 : i32
    %c0_i32_1 = arith.constant 0 : i32
    return %arg0, %c0_i32, %c0_i32_0 : i32, i32, i32
  }
  func.func @transform_1(%arg0: i32) -> (i32, i32, i32) {
    %c0_i32 = arith.constant 0 : i32
    %c0_i32_0 = arith.constant 0 : i32
    %c0_i32_1 = arith.constant 0 : i32
    return %arg0, %c0_i32, %c0_i32_0 : i32, i32, i32
  }
  func.func @transform_2(%arg0: i32) -> (i32, i32, i32, i32) {
    %c0_i32 = arith.constant 0 : i32
    %c0_i32_0 = arith.constant 0 : i32
    %c0_i32_1 = arith.constant 0 : i32
    %c0_i32_2 = arith.constant 0 : i32
    return %arg0, %c0_i32, %c0_i32_0, %c0_i32_1 : i32, i32, i32, i32
  }
  func.func @transform_3(%arg0: i32) -> (i32, i32) {
    %c0_i32 = arith.constant 0 : i32
    %c0_i32_0 = arith.constant 0 : i32
    %c0_i32_1 = arith.constant 0 : i32
    return %c0_i32, %c0_i32_0 : i32, i32
  }
  func.func @transform_4(%arg0: i32) -> (i32, i32, i32) {
    %c0_i32 = arith.constant 0 : i32
    %c0_i32_0 = arith.constant 0 : i32
    %c0_i32_1 = arith.constant 0 : i32
    return %arg0, %c0_i32, %c0_i32_0 : i32, i32, i32
  }
  func.func @transform_5(%arg0: i32) -> (i32, i32, i32) {
    %c0_i32 = arith.constant 0 : i32
    %c0_i32_0 = arith.constant 0 : i32
    %c0_i32_1 = arith.constant 0 : i32
    return %arg0, %c0_i32, %c0_i32_0 : i32, i32, i32
  }
}

</mosaic_0001>

<llo_original>
// kernel: tpu_custom_call.1
$region0: #{tpu_custom_call.1}
  #allocation0 [shape = 'u32[]', space=smem, size = 0x4, offset = 0x4, fixed_abs, tag = 'smem constant byte address 0x4 - core index']
  #allocation1 [shape = 'u32[144,128]{1,0:T(1,128)}', space=vmem, size = 0x12000, scoped, tag = 'internal scratch']
  %s0 = inlined_call_operand.vmem [shape: f32[2,8,32], index: 0, kind: input, shape index: {}]
  %s1 = inlined_call_operand.vmem [shape: f32[2,8,16], index: 1, kind: input, shape index: {}]
  %s2 = inlined_call_operand.vmem [shape: f32[2,8,8,16], index: 2, kind: input, shape index: {}]
  %s3 = inlined_call_operand.vmem [shape: f32[168,64], index: 3, kind: input, shape index: {}]
  %s4 = inlined_call_operand.hbm [shape: f32[2,8,32], index: 4, kind: output, shape index: {0}]
  %s5 = inlined_call_operand.hbm [shape: f32[2,8,16], index: 5, kind: output, shape index: {1}]
  %6 = xla_tuple %s4, %s5
  %s7 = sld [smem:[#allocation0]]
  $region57: #{tpu_custom_call.1} parent=0
    _
  %s9 = ssub.s32 1, %s7
  %s10 = scalar_select 0, %s9, %s7
  $region1: #{tpu_custom_call.1} parent=0
    #allocation2 [shape = 'u8[8192]{0}', space=vmem, size = 0x2000, scoped, tag = 'output window, operand 0']
    #allocation3 [shape = 's32[2]{0}', space=sflag, size = 0x8, scoped, tag = 'scoped memory for tpu_custom_call.1']
    #allocation4 [shape = 'u8[8192]{0}', space=vmem, size = 0x2000, scoped, tag = 'output window, operand 1']
    #allocation5 [shape = 's32[2]{0}', space=sflag, size = 0x8, scoped, tag = 'scoped memory for tpu_custom_call.1']
    %11 = vsyncpa [#allocation3], 0
    %s12 = scalar_lea.sflag [#allocation3], 1
    %13 = vsyncpa %s12, 0
    %14 = vsyncpa [#allocation5], 0
    %s15 = scalar_lea.sflag [#allocation5], 1
    %16 = vsyncpa %s15, 0
    loop: start=0, step=1, limit=4
    $region2: #{tpu_custom_call.1} parent=1 // loop_pre_header
      _
    $region3: #{tpu_custom_call.1} parent=1 // loop_header
      %s18 = sphi 0, %s22
      %p19 = scmp.ge.s32.totalorder %s18, 4
      %s28 = sphi 0, %s30
      %s31 = sphi 0, %s28
      %s32 = sphi 0, %s31
      %s48 = sphi 0, %s32
      %s54 = sphi 0, %s56
      %s57 = sphi 0, %s54
      %s58 = sphi 0, %s57
      %s74 = sphi 0, %s58
      %s80 = sphi 0, %s82
      %s83 = sphi 0, %s80
      %s84 = sphi 0, %s83
      %s100 = sphi 0, %s84
      %s104 = sphi 0, %s104
      %s106 = sphi 0, %s104
      %s107 = sphi 0, %s106
      %s121 = sphi 0, %s107
      %s127 = sphi 0, %s129
      %s130 = sphi 0, %s127
      %s131 = sphi 0, %s130
      %s147 = sphi 0, %s131
      %s153 = sphi 0, %s155
      %s156 = sphi 0, %s153
      %s157 = sphi 0, %s156
      %s173 = sphi 0, %s157
    $region4: #{tpu_custom_call.1} parent=1 // loop_header_branch
      %21 = sbr.rel (%p19) target = $region8
    $region5: #{tpu_custom_call.1} parent=1 // loop_body
      %s23 = ssub.s32 %s18, 1
      %s24 = ssub.s32 %s18, 2
      %s25 = sadd.s32 %s18, 1
      %s26 = ssub.s32 %s18, %s25
      %p27 = scmp.eq.s32.totalorder %s26, 0
      %s29 = sadd.s32 %s28, 1
      %s30 = scalar_select %p27, %s28, %s29
      %p33 = pneg %p27
      %p34 = scmp.eq.s32.totalorder %s18, 1
      %p35 = por %p33, %p34
      %p36 = scmp.ne.s32.totalorder %s28, %s31
      %p37 = scmp.eq.s32.totalorder %s18, 0
      %p38 = por %p36, %p37
      %p39 = scmp.ne.s32.totalorder %s28, %s31
      %p40 = scmp.eq.s32.totalorder %s23, 1
      %p41 = por %p39, %p40
      %p42 = scmp.ne.s32.totalorder %s31, %s32
      %p43 = scmp.eq.s32.totalorder %s23, 0
      %p44 = por %p42, %p43
      %p45 = scmp.ne.s32.totalorder %s31, %s32
      %p46 = scmp.eq.s32.totalorder %s24, 1
      %p47 = por %p45, %p46
      %p49 = scmp.ne.s32.totalorder %s32, %s48
      %p50 = scmp.eq.s32.totalorder %s24, 0
      %p51 = por %p49, %p50
      %s52 = ssub.s32 %s18, %s25
      %p53 = scmp.eq.s32.totalorder %s52, 0
      %s55 = sadd.s32 %s54, 1
      %s56 = scalar_select %p53, %s54, %s55
      %p59 = pneg %p53
      %p60 = scmp.eq.s32.totalorder %s18, 1
      %p61 = por %p59, %p60
      %p62 = scmp.ne.s32.totalorder %s54, %s57
      %p63 = scmp.eq.s32.totalorder %s18, 0
      %p64 = por %p62, %p63
      %p65 = scmp.ne.s32.totalorder %s54, %s57
      %p66 = scmp.eq.s32.totalorder %s23, 1
      %p67 = por %p65, %p66
      %p68 = scmp.ne.s32.totalorder %s57, %s58
      %p69 = scmp.eq.s32.totalorder %s23, 0
      %p70 = por %p68, %p69
      %p71 = scmp.ne.s32.totalorder %s57, %s58
      %p72 = scmp.eq.s32.totalorder %s24, 1
      %p73 = por %p71, %p72
      %p75 = scmp.ne.s32.totalorder %s58, %s74
      %p76 = scmp.eq.s32.totalorder %s24, 0
      %p77 = por %p75, %p76
      %s78 = ssub.s32 %s18, %s25
      %p79 = scmp.eq.s32.totalorder %s78, 0
      %s81 = sadd.s32 %s80, 1
      %s82 = scalar_select %p79, %s80, %s81
      %p85 = pneg %p79
      %p86 = scmp.eq.s32.totalorder %s18, 1
      %p87 = por %p85, %p86
      %p88 = scmp.ne.s32.totalorder %s80, %s83
      %p89 = scmp.eq.s32.totalorder %s18, 0
      %p90 = por %p88, %p89
      %p91 = scmp.ne.s32.totalorder %s80, %s83
      %p92 = scmp.eq.s32.totalorder %s23, 1
      %p93 = por %p91, %p92
      %p94 = scmp.ne.s32.totalorder %s83, %s84
      %p95 = scmp.eq.s32.totalorder %s23, 0
      %p96 = por %p94, %p95
      %p97 = scmp.ne.s32.totalorder %s83, %s84
      %p98 = scmp.eq.s32.totalorder %s24, 1
      %p99 = por %p97, %p98
      %p101 = scmp.ne.s32.totalorder %s84, %s100
      %p102 = scmp.eq.s32.totalorder %s24, 0
      %p103 = por %p101, %p102
      %s105 = sadd.s32 %s104, 1
      %p108 = scmp.eq.s32.totalorder %s18, 1
      %p109 = scmp.ne.s32.totalorder %s104, %s106
      %p110 = scmp.eq.s32.totalorder %s18, 0
      %p111 = por %p109, %p110
      %p112 = scmp.ne.s32.totalorder %s104, %s106
      %p113 = scmp.eq.s32.totalorder %s23, 1
      %p114 = por %p112, %p113
      %p115 = scmp.ne.s32.totalorder %s106, %s107
      %p116 = scmp.eq.s32.totalorder %s23, 0
      %p117 = por %p115, %p116
      %p118 = scmp.ne.s32.totalorder %s106, %s107
      %p119 = scmp.eq.s32.totalorder %s24, 1
      %p120 = por %p118, %p119
      %p122 = scmp.ne.s32.totalorder %s107, %s121
      %p123 = scmp.eq.s32.totalorder %s24, 0
      %p124 = por %p122, %p123
      %s125 = ssub.s32 %s18, %s25
      %p126 = scmp.eq.s32.totalorder %s125, 0
      %s128 = sadd.s32 %s127, 1
      %s129 = scalar_select %p126, %s127, %s128
      %p132 = pneg %p126
      %p133 = scmp.eq.s32.totalorder %s18, 1
      %p134 = por %p132, %p133
      %p135 = scmp.ne.s32.totalorder %s127, %s130
      %p136 = scmp.eq.s32.totalorder %s18, 0
      %p137 = por %p135, %p136
      %p138 = scmp.ne.s32.totalorder %s127, %s130
      %p139 = scmp.eq.s32.totalorder %s23, 1
      %p140 = por %p138, %p139
      %p141 = scmp.ne.s32.totalorder %s130, %s131
      %p142 = scmp.eq.s32.totalorder %s23, 0
      %p143 = por %p141, %p142
      %p144 = scmp.ne.s32.totalorder %s130, %s131
      %p145 = scmp.eq.s32.totalorder %s24, 1
      %p146 = por %p144, %p145
      %p148 = scmp.ne.s32.totalorder %s131, %s147
      %p149 = scmp.eq.s32.totalorder %s24, 0
      %p150 = por %p148, %p149
      %s151 = ssub.s32 %s18, %s25
      %p152 = scmp.eq.s32.totalorder %s151, 0
      %s154 = sadd.s32 %s153, 1
      %s155 = scalar_select %p152, %s153, %s154
      %p158 = pneg %p152
      %p159 = scmp.eq.s32.totalorder %s18, 1
      %p160 = por %p158, %p159
      %p161 = scmp.ne.s32.totalorder %s153, %s156
      %p162 = scmp.eq.s32.totalorder %s18, 0
      %p163 = por %p161, %p162
      %p164 = scmp.ne.s32.totalorder %s153, %s156
      %p165 = scmp.eq.s32.totalorder %s23, 1
      %p166 = por %p164, %p165
      %p167 = scmp.ne.s32.totalorder %s156, %s157
      %p168 = scmp.eq.s32.totalorder %s23, 0
      %p169 = por %p167, %p168
      %p170 = scmp.ne.s32.totalorder %s156, %s157
      %p171 = scmp.eq.s32.totalorder %s24, 1
      %p172 = por %p170, %p171
      %p174 = scmp.ne.s32.totalorder %s157, %s173
      %p175 = scmp.eq.s32.totalorder %s24, 0
      %p176 = por %p174, %p175
      %p177 = scmp.le.s32.totalorder 1, %s18
      %p178 = scmp.lt.s32.totalorder %s18, 3
      %p179 = pnand %p177, %p178
      %p180 = pneg %p179
      // Predicated region
      $region9: #{tpu_custom_call.1} parent=5 // pred_check
        _
      $region10: #{tpu_custom_call.1} parent=5 // pred_check_branch
        %182 = sbr.rel (%p179) target = $region12
      $region11: #{tpu_custom_call.1} parent=5 // pred_region
        %s183 = ssub.s32 %s18, 1
        // Predicated region
        $region13: #{tpu_custom_call.1} parent=11 // pred_check
          %p184 = pneg %p117
        $region14: #{tpu_custom_call.1} parent=11 // pred_check_branch
          %186 = sbr.rel (%p184) target = $region16
        $region15: #{tpu_custom_call.1} parent=11 // pred_region
          _
        $region16: #{tpu_custom_call.1} parent=11 // pred_fallthru
          _
      $region12: #{tpu_custom_call.1} parent=5 // pred_fallthru
        _
      %p187 = scmp.lt.s32.totalorder %s18, 2
      // Predicated region
      $region17: #{tpu_custom_call.1} parent=5 // pred_check
        %p188 = pneg %p187
      $region18: #{tpu_custom_call.1} parent=5 // pred_check_branch
        %190 = sbr.rel (%p188) target = $region20
      $region19: #{tpu_custom_call.1} parent=5 // pred_region
        // Predicated region
        $region21: #{tpu_custom_call.1} parent=19 // pred_check
          %p191 = pneg %p38
        $region22: #{tpu_custom_call.1} parent=19 // pred_check_branch
          %193 = sbr.rel (%p191) target = $region24
        $region23: #{tpu_custom_call.1} parent=19 // pred_region
          %p194 = scmp.lt.s32.totalorder %s18, 1
          %s195 = scalar_select %p194, %s18, 1
          %s196 = smul.addr %s195, 8
          %s197 = scalar_lea.vmem %s0, %s196
        $region24: #{tpu_custom_call.1} parent=19 // pred_fallthru
          _
        // Predicated region
        $region25: #{tpu_custom_call.1} parent=19 // pred_check
          %p198 = pneg %p64
        $region26: #{tpu_custom_call.1} parent=19 // pred_check_branch
          %200 = sbr.rel (%p198) target = $region28
        $region27: #{tpu_custom_call.1} parent=19 // pred_region
          %p201 = scmp.lt.s32.totalorder %s18, 1
          %s202 = scalar_select %p201, %s18, 1
          %s203 = smul.addr %s202, 8
          %s204 = scalar_lea.vmem %s1, %s203
        $region28: #{tpu_custom_call.1} parent=19 // pred_fallthru
          _
        // Predicated region
        $region29: #{tpu_custom_call.1} parent=19 // pred_check
          %p205 = pneg %p90
        $region30: #{tpu_custom_call.1} parent=19 // pred_check_branch
          %207 = sbr.rel (%p205) target = $region32
        $region31: #{tpu_custom_call.1} parent=19 // pred_region
          %p208 = scmp.lt.s32.totalorder %s18, 1
          %s209 = scalar_select %p208, %s18, 1
          %s210 = smul.addr %s209, 8
          %s211 = smul.addr %s210, 8
          %s212 = scalar_lea.vmem %s2, %s211
        $region32: #{tpu_custom_call.1} parent=19 // pred_fallthru
          _
      $region20: #{tpu_custom_call.1} parent=5 // pred_fallthru
        _
      %p213 = scmp.le.s32.totalorder 1, %s18
      %p214 = scmp.lt.s32.totalorder %s18, 3
      %p215 = pnand %p213, %p214
      %p216 = pneg %p215
      // Predicated region
      $region33: #{tpu_custom_call.1} parent=5 // pred_check
        _
      $region34: #{tpu_custom_call.1} parent=5 // pred_check_branch
        %218 = sbr.rel (%p215) target = $region36
      $region35: #{tpu_custom_call.1} parent=5 // pred_region
        %s219 = ssub.s32 %s18, 1
        %p220 = scmp.lt.s32.totalorder %s23, 1
        %s221 = scalar_select %p220, %s23, 1
        %s222 = smul.addr %s221, 8
        %s223 = scalar_lea.vmem %s0, %s222
        %p224 = pneg %p44
        %p225 = pneg %p41
        %p226 = scmp.lt.s32.totalorder %s23, 1
        %s227 = scalar_select %p226, %s23, 1
        %s228 = smul.addr %s227, 8
        %s229 = scalar_lea.vmem %s1, %s228
        %p230 = pneg %p70
        %p231 = pneg %p67
        %p232 = scmp.lt.s32.totalorder %s23, 1
        %s233 = scalar_select %p232, %s23, 1
        %s234 = smul.addr %s233, 8
        %s235 = smul.addr %s234, 8
        %s236 = scalar_lea.vmem %s2, %s235
        %p237 = pneg %p96
        %p238 = pneg %p93
        %p239 = pneg %p117
        %p240 = pneg %p114
        %p241 = pneg %p143
        %p242 = pneg %p140
        %s243 = sand.u32 %s130, 1
        %s244 = scalar_lea.sflag [#allocation3], %s243
        %s245 = sand.u32 %s130, 1
        %s246 = smul.addr %s245, 8
        %s247 = scalar_lea.vmem [#allocation2], %s246
        %p248 = pneg %p169
        %p249 = pneg %p166
        %s250 = sand.u32 %s156, 1
        %s251 = scalar_lea.sflag [#allocation5], %s250
        %s252 = sand.u32 %s156, 1
        %s253 = smul.addr %s252, 8
        %s254 = scalar_lea.vmem [#allocation4], %s253
        %p255 = scmp.lt.s32.totalorder %s23, 1
        %s256 = scalar_select %p255, %s23, 1
        %s257 = smul.addr %s256, 8
        %s258 = scalar_lea.vmem %s0, %s257
        %p259 = scmp.lt.s32.totalorder %s23, 1
        %s260 = scalar_select %p259, %s23, 1
        %s261 = smul.addr %s260, 8
        %s262 = scalar_lea.vmem %s1, %s261
        %p263 = scmp.lt.s32.totalorder %s23, 1
        %s264 = scalar_select %p263, %s23, 1
        %s265 = smul.addr %s264, 8
        %s266 = smul.addr %s265, 8
        %s267 = scalar_lea.vmem %s2, %s266
        %v268 = vld [vmem:[%s258] sm:$0xff]
        %v269 = vld [vmem:[%s262] sm:$0xff]
        %v270 = vld [vmem:[%s3] sm:$0xff]
        %v271 = vld [vmem:[%s3 + $0x8] sm:$0xff]
        %v272 = vld [vmem:[%s3 + $0x10] sm:$0xff]
        %v273 = vld [vmem:[%s3 + $0x18] sm:$0xff]
        %v274 = vld [vmem:[%s3 + $0x20] sm:$0xff]
        %v275 = vld [vmem:[%s3 + $0x28] sm:$0xff]
        %v276 = vld [vmem:[%s3 + $0x30] sm:$0xff]
        %v277 = vld [vmem:[%s3 + $0x38] sm:$0xff]
        %v278 = vld [vmem:[%s3 + $0x40] sm:$0xff]
        %v279 = vld [vmem:[%s3 + $0x48] sm:$0xff]
        %v280 = vld [vmem:[%s3 + $0x50] sm:$0xff]
        %v281 = vld [vmem:[%s3 + $0x58] sm:$0xff]
        %v282 = vld [vmem:[%s3 + $0x60] sm:$0xff]
        %v283 = vld [vmem:[%s3 + $0x68] sm:$0xff]
        %v284 = vld [vmem:[%s3 + $0x70] sm:$0xff]
        %v285 = vld [vmem:[%s3 + $0x78] sm:$0xff]
        %v286 = vld [vmem:[%s3 + $0x80] sm:$0xff]
        %v287 = vld [vmem:[%s3 + $0x88] sm:$0xff]
        %v288 = vld [vmem:[%s3 + $0x90] sm:$0xff]
        %v289 = vld [vmem:[%s3 + $0x98] sm:$0xff]
        %v290 = vld [vmem:[%s3 + $0xa0] sm:$0xff]
        %vm291 = vcmask 261120
        %v293 = vsel %vm291, %v268, 0
        %295 = vmatprep.subr.mxu0 0.0
        %296 = vmatpush1.msra.mxu0 %v270
        %297 = vmatprep.subr.mxu0 0.0
        %298 = vmatpush1.msra.mxu0 %v271
        %299 = vmatprep.subr.mxu0 0.0
        %300 = vmatpush1.msra.mxu0 %v272
        %301 = vmatprep.subr.mxu0 0.0
        %302 = vmatpush1.msra.mxu0 %v273
        %303 = vmatprep.subr.mxu0 0.0
        %304 = vmatpush1.msra.mxu0 0.0
        %305 = vmatprep.subr.mxu0 0.0
        %306 = vmatpush1.msra.mxu0 0.0
        %307 = vmatprep.subr.mxu0 0.0
        %308 = vmatpush1.msra.mxu0 0.0
        %309 = vmatprep.subr.mxu0 0.0
        %310 = vmatpush1.msra.mxu0 0.0
        %311 = vmatprep.subr.mxu0 0.0
        %312 = vmatpush1.msra.mxu0 0.0
        %313 = vmatprep.subr.mxu0 0.0
        %314 = vmatpush1.msra.mxu0 0.0
        %315 = vmatprep.subr.mxu0 0.0
        %316 = vmatpush1.msra.mxu0 0.0
        %317 = vmatprep.subr.mxu0 0.0
        %318 = vmatpush1.msra.mxu0 0.0
        %319 = vmatprep.subr.mxu0 0.0
        %320 = vmatpush1.msra.mxu0 0.0
        %321 = vmatprep.subr.mxu0 0.0
        %322 = vmatpush1.msra.mxu0 0.0
        %323 = vmatprep.subr.mxu0 0.0
        %324 = vmatpush1.msra.mxu0 0.0
        %325 = vmatprep.subr.mxu0 0.0
        %326 = vmatpush1.msra.mxu0 0.0
        %327 = vmatprep.subr.mxu0 0.0
        %328 = vmatpush1.msra.mxu0 0.0
        %329 = vmatprep.subr.mxu0 0.0
        %330 = vmatpush1.msra.mxu0 0.0
        %331 = vmatprep.subr.mxu0 0.0
        %332 = vmatpush1.msra.mxu0 0.0
        %333 = vmatprep.subr.mxu0 0.0
        %334 = vmatpush1.msra.mxu0 0.0
        %335 = vmatprep.subr.mxu0 0.0
        %336 = vmatpush1.msra.mxu0 0.0
        %337 = vmatprep.subr.mxu0 0.0
        %338 = vmatpush1.msra.mxu0 0.0
        %339 = vmatprep.subr.mxu0 0.0
        %340 = vmatpush1.msra.mxu0 0.0
        %341 = vmatprep.subr.mxu0 0.0
        %342 = vmatpush1.msra.mxu0 0.0
        %343 = vmatprep.subr.mxu0 0.0
        %344 = vmatpush1.msra.mxu0 0.0
        %345 = vmatprep.subr.mxu0 0.0
        %346 = vmatpush1.msra.mxu0 0.0
        %347 = vmatprep.subr.mxu0 0.0
        %348 = vmatpush1.msra.mxu0 0.0
        %349 = vmatprep.subr.mxu0 0.0
        %350 = vmatpush1.msra.mxu0 0.0
        %351 = vmatprep.subr.mxu0 0.0
        %352 = vmatpush1.msra.mxu0 0.0
        %353 = vmatprep.subr.mxu0 0.0
        %354 = vmatpush1.msra.mxu0 0.0
        %355 = vmatprep.subr.mxu0 0.0
        %356 = vmatpush1.msra.mxu0 0.0
        %357 = vmatprep.subr.mxu0 0.0
        %358 = vmatpush1.msra.mxu0 0.0
        %359 = vmatprep.mubr.f32.mxu0 0.0
        %360 = vmatmul.mubr.f32.gmra.mrb[0].mxu0 %v293
        %v361 = vpop.f32.mrb[0].mxu0
        %v362 = vadd.f32 0.0, %v361
        %v363 = vpop.f32.mrb[0].mxu0
        %364 = vdwg.mxu0
        %v365 = vld [vmem:[%s267] sm:$0xff]
        %v366 = vld [vmem:[%s267 + $0x8] sm:$0xff]
        %v367 = vld [vmem:[%s267 + $0x10] sm:$0xff]
        %v368 = vld [vmem:[%s267 + $0x18] sm:$0xff]
        %v369 = vld [vmem:[%s267 + $0x20] sm:$0xff]
        %v370 = vld [vmem:[%s267 + $0x28] sm:$0xff]
        %v371 = vld [vmem:[%s267 + $0x30] sm:$0xff]
        %v372 = vld [vmem:[%s267 + $0x38] sm:$0xff]
        %vm373 = vcmask 130048
        %v375 = vsel %vm373, %v365, 0
        %v378 = vsel %vm373, %v366, 0
        %v381 = vsel %vm373, %v367, 0
        %v384 = vsel %vm373, %v368, 0
        %v387 = vsel %vm373, %v369, 0
        %v390 = vsel %vm373, %v370, 0
        %v393 = vsel %vm373, %v371, 0
        %v396 = vsel %vm373, %v372, 0
        %398 = vmatprep.subr.mxu0 0.0
        %399 = vmatpush1.msra.mxu0 %v274
        %400 = vmatprep.subr.mxu0 0.0
        %401 = vmatpush1.msra.mxu0 %v275
        %402 = vmatprep.subr.mxu0 0.0
        %403 = vmatpush1.msra.mxu0 0.0
        %404 = vmatprep.subr.mxu0 0.0
        %405 = vmatpush1.msra.mxu0 0.0
        %406 = vmatprep.subr.mxu0 0.0
        %407 = vmatpush1.msra.mxu0 0.0
        %408 = vmatprep.subr.mxu0 0.0
        %409 = vmatpush1.msra.mxu0 0.0
        %410 = vmatprep.subr.mxu0 0.0
        %411 = vmatpush1.msra.mxu0 0.0
        %412 = vmatprep.subr.mxu0 0.0
        %413 = vmatpush1.msra.mxu0 0.0
        %414 = vmatprep.subr.mxu0 0.0
        %415 = vmatpush1.msra.mxu0 0.0
        %416 = vmatprep.subr.mxu0 0.0
        %417 = vmatpush1.msra.mxu0 0.0
        %418 = vmatprep.subr.mxu0 0.0
        %419 = vmatpush1.msra.mxu0 0.0
        %420 = vmatprep.subr.mxu0 0.0
        %421 = vmatpush1.msra.mxu0 0.0
        %422 = vmatprep.subr.mxu0 0.0
        %423 = vmatpush1.msra.mxu0 0.0
        %424 = vmatprep.subr.mxu0 0.0
        %425 = vmatpush1.msra.mxu0 0.0
        %426 = vmatprep.subr.mxu0 0.0
        %427 = vmatpush1.msra.mxu0 0.0
        %428 = vmatprep.subr.mxu0 0.0
        %429 = vmatpush1.msra.mxu0 0.0
        %430 = vmatprep.subr.mxu0 0.0
        %431 = vmatpush1.msra.mxu0 0.0
        %432 = vmatprep.subr.mxu0 0.0
        %433 = vmatpush1.msra.mxu0 0.0
        %434 = vmatprep.subr.mxu0 0.0
        %435 = vmatpush1.msra.mxu0 0.0
        %436 = vmatprep.subr.mxu0 0.0
        %437 = vmatpush1.msra.mxu0 0.0
        %438 = vmatprep.subr.mxu0 0.0
        %439 = vmatpush1.msra.mxu0 0.0
        %440 = vmatprep.subr.mxu0 0.0
        %441 = vmatpush1.msra.mxu0 0.0
        %442 = vmatprep.subr.mxu0 0.0
        %443 = vmatpush1.msra.mxu0 0.0
        %444 = vmatprep.subr.mxu0 0.0
        %445 = vmatpush1.msra.mxu0 0.0
        %446 = vmatprep.subr.mxu0 0.0
        %447 = vmatpush1.msra.mxu0 0.0
        %448 = vmatprep.subr.mxu0 0.0
        %449 = vmatpush1.msra.mxu0 0.0
        %450 = vmatprep.subr.mxu0 0.0
        %451 = vmatpush1.msra.mxu0 0.0
        %452 = vmatprep.subr.mxu0 0.0
        %453 = vmatpush1.msra.mxu0 0.0
        %454 = vmatprep.subr.mxu0 0.0
        %455 = vmatpush1.msra.mxu0 0.0
        %456 = vmatprep.subr.mxu0 0.0
        %457 = vmatpush1.msra.mxu0 0.0
        %458 = vmatprep.subr.mxu0 0.0
        %459 = vmatpush1.msra.mxu0 0.0
        %460 = vmatprep.subr.mxu0 0.0
        %461 = vmatpush1.msra.mxu0 0.0
        %462 = vmatprep.mubr.f32.mxu0 0.0
        %463 = vmatmul.mubr.f32.gmra.mrb[0].mxu0 %v375
        %v464 = vpop.f32.mrb[0].mxu0
        %v465 = vadd.f32 0.0, %v464
        %v466 = vpop.f32.mrb[0].mxu0
        %467 = vmatprep.mubr.f32.mxu0 0.0
        %468 = vmatmul.mubr.f32.gmra.mrb[0].mxu0 %v378
        %v469 = vpop.f32.mrb[0].mxu0
        %v470 = vadd.f32 0.0, %v469
        %v471 = vpop.f32.mrb[0].mxu0
        %472 = vmatprep.mubr.f32.mxu0 0.0
        %473 = vmatmul.mubr.f32.gmra.mrb[0].mxu0 %v381
        %v474 = vpop.f32.mrb[0].mxu0
        %v475 = vadd.f32 0.0, %v474
        %v476 = vpop.f32.mrb[0].mxu0
        %477 = vmatprep.mubr.f32.mxu0 0.0
        %478 = vmatmul.mubr.f32.gmra.mrb[0].mxu0 %v384
        %v479 = vpop.f32.mrb[0].mxu0
        %v480 = vadd.f32 0.0, %v479
        %v481 = vpop.f32.mrb[0].mxu0
        %482 = vmatprep.mubr.f32.mxu0 0.0
        %483 = vmatmul.mubr.f32.gmra.mrb[0].mxu0 %v387
        %v484 = vpop.f32.mrb[0].mxu0
        %v485 = vadd.f32 0.0, %v484
        %v486 = vpop.f32.mrb[0].mxu0
        %487 = vmatprep.mubr.f32.mxu0 0.0
        %488 = vmatmul.mubr.f32.gmra.mrb[0].mxu0 %v390
        %v489 = vpop.f32.mrb[0].mxu0
        %v490 = vadd.f32 0.0, %v489
        %v491 = vpop.f32.mrb[0].mxu0
        %492 = vmatprep.mubr.f32.mxu0 0.0
        %493 = vmatmul.mubr.f32.gmra.mrb[0].mxu0 %v393
        %v494 = vpop.f32.mrb[0].mxu0
        %v495 = vadd.f32 0.0, %v494
        %v496 = vpop.f32.mrb[0].mxu0
        %497 = vmatprep.mubr.f32.mxu0 0.0
        %498 = vmatmul.mubr.f32.gmra.mrb[0].mxu0 %v396
        %v499 = vpop.f32.mrb[0].mxu0
        %v500 = vadd.f32 0.0, %v499
        %v501 = vpop.f32.mrb[0].mxu0
        %502 = vdwg.mxu0
        %v504 = vcombine.high %v362, %v362
        %v506 = vunpack.c.l.s4 1966171168
        %v507 = vunpack.c.0.s8 %v506
        %v508 = vlaneseq
        %v509 = vshrl.u32 %v508, 7
        %v510 = vsub.s32 %v507, %v509
        %v511 = vrot.slane %v362, %v510
        %v513 = vunpack.c.l.s4 1966171168
        %v514 = vunpack.c.0.s8 %v513
        %v515 = vlaneseq
        %v516 = vshrl.u32 %v515, 7
        %v517 = vsub.s32 %v514, %v516
        %v518 = vrot.slane %v504, %v517
        %v519 = vcombine.high %v511, %v511
        %v520 = vcombine.high %v518, %v518
        %v522 = vunpack.c.l.s4 1966171168
        %v523 = vunpack.c.0.s8 %v522
        %v524 = vlaneseq
        %v525 = vshrl.u32 %v524, 7
        %v526 = vsub.s32 %v523, %v525
        %v527 = vrot.slane %v511, %v526
        %v529 = vunpack.c.l.s4 1966171168
        %v530 = vunpack.c.0.s8 %v529
        %v531 = vlaneseq
        %v532 = vshrl.u32 %v531, 7
        %v533 = vsub.s32 %v530, %v532
        %v534 = vrot.slane %v518, %v533
        %v536 = vunpack.c.l.s4 1966171168
        %v537 = vunpack.c.0.s8 %v536
        %v538 = vlaneseq
        %v539 = vshrl.u32 %v538, 7
        %v540 = vsub.s32 %v537, %v539
        %v541 = vrot.slane %v519, %v540
        %v543 = vunpack.c.l.s4 1966171168
        %v544 = vunpack.c.0.s8 %v543
        %v545 = vlaneseq
        %v546 = vshrl.u32 %v545, 7
        %v547 = vsub.s32 %v544, %v546
        %v548 = vrot.slane %v520, %v547
        %v549 = vcombine.high %v527, %v527
        %v550 = vcombine.high %v534, %v534
        %v551 = vcombine.high %v541, %v541
        %v552 = vcombine.high %v548, %v548
        %v553 = vlaneseq
        %v554 = vshrl.u32 %v553, 7
        %v555 = vsub.s32 0, %v554
        %v556 = vrot.slane %v527, %v555
        %v557 = vlaneseq
        %v558 = vshrl.u32 %v557, 7
        %v559 = vsub.s32 0, %v558
        %v560 = vrot.slane %v541, %v559
        %v561 = vlaneseq
        %v562 = vshrl.u32 %v561, 7
        %v563 = vsub.s32 0, %v562
        %v564 = vrot.slane %v549, %v563
        %v565 = vlaneseq
        %v566 = vshrl.u32 %v565, 7
        %v567 = vsub.s32 0, %v566
        %v568 = vrot.slane %v551, %v567
        %v569 = vlaneseq
        %v570 = vshrl.u32 %v569, 7
        %v571 = vsub.s32 0, %v570
        %v572 = vrot.slane %v534, %v571
        %v573 = vlaneseq
        %v574 = vshrl.u32 %v573, 7
        %v575 = vsub.s32 0, %v574
        %v576 = vrot.slane %v548, %v575
        %v577 = vlaneseq
        %v578 = vshrl.u32 %v577, 7
        %v579 = vsub.s32 0, %v578
        %v580 = vrot.slane %v550, %v579
        %v581 = vlaneseq
        %v582 = vshrl.u32 %v581, 7
        %v583 = vsub.s32 0, %v582
        %v584 = vrot.slane %v552, %v583
        %593 = vrot.lane.b32.xlu0 %v362, 96
        %v594 = vpop.permute.xlu0 %593
        %v596 = vadd.f32 %v556, %v594
        %v597 = vadd.f32 %v560, %v594
        %v598 = vadd.f32 %v564, %v594
        %v599 = vadd.f32 %v568, %v594
        %v600 = vadd.f32 %v572, %v594
        %v601 = vadd.f32 %v576, %v594
        %v602 = vadd.f32 %v580, %v594
        %v603 = vadd.f32 %v584, %v594
        %v604 = vadd.f32 %v596, %v465
        %v605 = vadd.f32 %v597, %v470
        %v606 = vadd.f32 %v598, %v475
        %v607 = vadd.f32 %v599, %v480
        %v608 = vadd.f32 %v600, %v485
        %v609 = vadd.f32 %v601, %v490
        %v610 = vadd.f32 %v602, %v495
        %v611 = vadd.f32 %v603, %v500
        %v612 = vlaneseq
        %v613 = vshrl.u32 %v612, 7
        %v614 = vsub.s32 0, %v613
        %v615 = vrot.slane %v290, %v614
        %v616 = vadd.f32 %v604, %v615
        %v617 = vadd.f32 %v605, %v615
        %v618 = vadd.f32 %v606, %v615
        %v619 = vadd.f32 %v607, %v615
        %v620 = vadd.f32 %v608, %v615
        %v621 = vadd.f32 %v609, %v615
        %v622 = vadd.f32 %v610, %v615
        %v623 = vadd.f32 %v611, %v615
        %v624 = vmax.f32 %v616, 0.0
        %v625 = vmax.f32 %v617, 0.0
        %v626 = vmax.f32 %v618, 0.0
        %v627 = vmax.f32 %v619, 0.0
        %v628 = vmax.f32 %v620, 0.0
        %v629 = vmax.f32 %v621, 0.0
        %v630 = vmax.f32 %v622, 0.0
        %v631 = vmax.f32 %v623, 0.0
        %v633 = vsel %vm373, %v269, 0
        %635 = vmatprep.subr.mxu0 0.0
        %636 = vmatpush1.msra.mxu0 %v276
        %637 = vmatprep.subr.mxu0 0.0
        %638 = vmatpush1.msra.mxu0 %v277
        %639 = vmatprep.subr.mxu0 0.0
        %640 = vmatpush1.msra.mxu0 0.0
        %641 = vmatprep.subr.mxu0 0.0
        %642 = vmatpush1.msra.mxu0 0.0
        %643 = vmatprep.subr.mxu0 0.0
        %644 = vmatpush1.msra.mxu0 0.0
        %645 = vmatprep.subr.mxu0 0.0
        %646 = vmatpush1.msra.mxu0 0.0
        %647 = vmatprep.subr.mxu0 0.0
        %648 = vmatpush1.msra.mxu0 0.0
        %649 = vmatprep.subr.mxu0 0.0
        %650 = vmatpush1.msra.mxu0 0.0
        %651 = vmatprep.subr.mxu0 0.0
        %652 = vmatpush1.msra.mxu0 0.0
        %653 = vmatprep.subr.mxu0 0.0
        %654 = vmatpush1.msra.mxu0 0.0
        %655 = vmatprep.subr.mxu0 0.0
        %656 = vmatpush1.msra.mxu0 0.0
        %657 = vmatprep.subr.mxu0 0.0
        %658 = vmatpush1.msra.mxu0 0.0
        %659 = vmatprep.subr.mxu0 0.0
        %660 = vmatpush1.msra.mxu0 0.0
        %661 = vmatprep.subr.mxu0 0.0
        %662 = vmatpush1.msra.mxu0 0.0
        %663 = vmatprep.subr.mxu0 0.0
        %664 = vmatpush1.msra.mxu0 0.0
        %665 = vmatprep.subr.mxu0 0.0
        %666 = vmatpush1.msra.mxu0 0.0
        %667 = vmatprep.subr.mxu0 0.0
        %668 = vmatpush1.msra.mxu0 0.0
        %669 = vmatprep.subr.mxu0 0.0
        %670 = vmatpush1.msra.mxu0 0.0
        %671 = vmatprep.subr.mxu0 0.0
        %672 = vmatpush1.msra.mxu0 0.0
        %673 = vmatprep.subr.mxu0 0.0
        %674 = vmatpush1.msra.mxu0 0.0
        %675 = vmatprep.subr.mxu0 0.0
        %676 = vmatpush1.msra.mxu0 0.0
        %677 = vmatprep.subr.mxu0 0.0
        %678 = vmatpush1.msra.mxu0 0.0
        %679 = vmatprep.subr.mxu0 0.0
        %680 = vmatpush1.msra.mxu0 0.0
        %681 = vmatprep.subr.mxu0 0.0
        %682 = vmatpush1.msra.mxu0 0.0
        %683 = vmatprep.subr.mxu0 0.0
        %684 = vmatpush1.msra.mxu0 0.0
        %685 = vmatprep.subr.mxu0 0.0
        %686 = vmatpush1.msra.mxu0 0.0
        %687 = vmatprep.subr.mxu0 0.0
        %688 = vmatpush1.msra.mxu0 0.0
        %689 = vmatprep.subr.mxu0 0.0
        %690 = vmatpush1.msra.mxu0 0.0
        %691 = vmatprep.subr.mxu0 0.0
        %692 = vmatpush1.msra.mxu0 0.0
        %693 = vmatprep.subr.mxu0 0.0
        %694 = vmatpush1.msra.mxu0 0.0
        %695 = vmatprep.subr.mxu0 0.0
        %696 = vmatpush1.msra.mxu0 0.0
        %697 = vmatprep.subr.mxu0 0.0
        %698 = vmatpush1.msra.mxu0 0.0
        %699 = vmatprep.mubr.f32.mxu0 0.0
        %700 = vmatmul.mubr.f32.gmra.mrb[0].mxu0 %v633
        %v701 = vpop.f32.mrb[0].mxu0
        %v702 = vadd.f32 0.0, %v701
        %v703 = vpop.f32.mrb[0].mxu0
        %704 = vdwg.mxu0
        %v706 = vcombine.high %v702, %v702
        %v708 = vunpack.c.l.s4 1966171168
        %v709 = vunpack.c.0.s8 %v708
        %v710 = vlaneseq
        %v711 = vshrl.u32 %v710, 7
        %v712 = vsub.s32 %v709, %v711
        %v713 = vrot.slane %v702, %v712
        %v715 = vunpack.c.l.s4 1966171168
        %v716 = vunpack.c.0.s8 %v715
        %v717 = vlaneseq
        %v718 = vshrl.u32 %v717, 7
        %v719 = vsub.s32 %v716, %v718
        %v720 = vrot.slane %v706, %v719
        %v721 = vcombine.high %v713, %v713
        %v722 = vcombine.high %v720, %v720
        %v724 = vunpack.c.l.s4 1966171168
        %v725 = vunpack.c.0.s8 %v724
        %v726 = vlaneseq
        %v727 = vshrl.u32 %v726, 7
        %v728 = vsub.s32 %v725, %v727
        %v729 = vrot.slane %v713, %v728
        %v731 = vunpack.c.l.s4 1966171168
        %v732 = vunpack.c.0.s8 %v731
        %v733 = vlaneseq
        %v734 = vshrl.u32 %v733, 7
        %v735 = vsub.s32 %v732, %v734
        %v736 = vrot.slane %v720, %v735
        %v738 = vunpack.c.l.s4 1966171168
        %v739 = vunpack.c.0.s8 %v738
        %v740 = vlaneseq
        %v741 = vshrl.u32 %v740, 7
        %v742 = vsub.s32 %v739, %v741
        %v743 = vrot.slane %v721, %v742
        %v745 = vunpack.c.l.s4 1966171168
        %v746 = vunpack.c.0.s8 %v745
        %v747 = vlaneseq
        %v748 = vshrl.u32 %v747, 7
        %v749 = vsub.s32 %v746, %v748
        %v750 = vrot.slane %v722, %v749
        %v751 = vcombine.high %v729, %v729
        %v752 = vcombine.high %v736, %v736
        %v753 = vcombine.high %v743, %v743
        %v754 = vcombine.high %v750, %v750
        %v755 = vlaneseq
        %v756 = vshrl.u32 %v755, 7
        %v757 = vsub.s32 0, %v756
        %v758 = vrot.slane %v729, %v757
        %v759 = vlaneseq
        %v760 = vshrl.u32 %v759, 7
        %v761 = vsub.s32 0, %v760
        %v762 = vrot.slane %v743, %v761
        %v763 = vlaneseq
        %v764 = vshrl.u32 %v763, 7
        %v765 = vsub.s32 0, %v764
        %v766 = vrot.slane %v751, %v765
        %v767 = vlaneseq
        %v768 = vshrl.u32 %v767, 7
        %v769 = vsub.s32 0, %v768
        %v770 = vrot.slane %v753, %v769
        %v771 = vlaneseq
        %v772 = vshrl.u32 %v771, 7
        %v773 = vsub.s32 0, %v772
        %v774 = vrot.slane %v736, %v773
        %v775 = vlaneseq
        %v776 = vshrl.u32 %v775, 7
        %v777 = vsub.s32 0, %v776
        %v778 = vrot.slane %v750, %v777
        %v779 = vlaneseq
        %v780 = vshrl.u32 %v779, 7
        %v781 = vsub.s32 0, %v780
        %v782 = vrot.slane %v752, %v781
        %v783 = vlaneseq
        %v784 = vshrl.u32 %v783, 7
        %v785 = vsub.s32 0, %v784
        %v786 = vrot.slane %v754, %v785
        %795 = vrot.lane.b32.xlu0 %v702, 112
        %v796 = vpop.permute.xlu0 %795
        %v798 = vadd.f32 %v758, %v796
        %v799 = vadd.f32 %v762, %v796
        %v800 = vadd.f32 %v766, %v796
        %v801 = vadd.f32 %v770, %v796
        %v802 = vadd.f32 %v774, %v796
        %v803 = vadd.f32 %v778, %v796
        %v804 = vadd.f32 %v782, %v796
        %v805 = vadd.f32 %v786, %v796
        %v806 = vlaneseq
        %v807 = vshrl.u32 %v806, 7
        %v808 = vsub.s32 1, %v807
        %v809 = vrot.slane %v290, %v808
        %v810 = vadd.f32 %v798, %v809
        %v811 = vadd.f32 %v799, %v809
        %v812 = vadd.f32 %v800, %v809
        %v813 = vadd.f32 %v801, %v809
        %v814 = vadd.f32 %v802, %v809
        %v815 = vadd.f32 %v803, %v809
        %v816 = vadd.f32 %v804, %v809
        %v817 = vadd.f32 %v805, %v809
        %v818 = vmax.f32 %v810, 0.0
        %v819 = vmax.f32 %v811, 0.0
        %v820 = vmax.f32 %v812, 0.0
        %v821 = vmax.f32 %v813, 0.0
        %v822 = vmax.f32 %v814, 0.0
        %v823 = vmax.f32 %v815, 0.0
        %v824 = vmax.f32 %v816, 0.0
        %v825 = vmax.f32 %v817, 0.0
        %v826 = vlaneseq
        %v827 = vshrl.u32 %v826, 7
        %v828 = vlaneseq
        %v829 = vand.u32 %v828, 127
        %vm830 = vcmp.eq.s32.totalorder %v827, %v829
        %v831 = vlaneseq
        %v832 = vshrl.u32 %v831, 7
        %v833 = vsub.s32 4, %v832
        %v834 = vrot.slane %v290, %v833
        %v835 = vmul.f32 %v624, %v834
        %v836 = vmul.f32 %v625, %v834
        %v837 = vmul.f32 %v626, %v834
        %v838 = vmul.f32 %v627, %v834
        %v839 = vmul.f32 %v628, %v834
        %v840 = vmul.f32 %v629, %v834
        %v841 = vmul.f32 %v630, %v834
        %v842 = vmul.f32 %v631, %v834
        %v843 = vsel %vm291, %v835, 0.0
        %844 = vadd.xlane.f32.xlu0 %v843
        %v845 = vpop.xlane.xlu0 %844
        %v846 = vsel %vm291, %v836, 0.0
        %847 = vadd.xlane.f32.xlu0 %v846
        %v848 = vpop.xlane.xlu0 %847
        %v849 = vsel %vm291, %v837, 0.0
        %850 = vadd.xlane.f32.xlu0 %v849
        %v851 = vpop.xlane.xlu0 %850
        %v852 = vsel %vm291, %v838, 0.0
        %853 = vadd.xlane.f32.xlu0 %v852
        %v854 = vpop.xlane.xlu0 %853
        %v855 = vsel %vm291, %v839, 0.0
        %856 = vadd.xlane.f32.xlu0 %v855
        %v857 = vpop.xlane.xlu0 %856
        %v858 = vsel %vm291, %v840, 0.0
        %859 = vadd.xlane.f32.xlu0 %v858
        %v860 = vpop.xlane.xlu0 %859
        %v861 = vsel %vm291, %v841, 0.0
        %862 = vadd.xlane.f32.xlu0 %v861
        %v863 = vpop.xlane.xlu0 %862
        %v864 = vsel %vm291, %v842, 0.0
        %865 = vadd.xlane.f32.xlu0 %v864
        %v866 = vpop.xlane.xlu0 %865
        %v868 = vrot.slane %v290, 6
        %s869 = vtos %v868
        %v870 = vstv %s869
        %v872 = vadd.f32 %v845, %v870
        %v873 = vadd.f32 %v848, %v870
        %v874 = vadd.f32 %v851, %v870
        %v875 = vadd.f32 %v854, %v870
        %v876 = vadd.f32 %v857, %v870
        %v877 = vadd.f32 %v860, %v870
        %v878 = vadd.f32 %v863, %v870
        %v879 = vadd.f32 %v866, %v870
        %vm880 = vcmp.gt.f32.partialorder %v872, 0.0
        %vm881 = vcmp.gt.f32.partialorder %v873, 0.0
        %vm882 = vcmp.gt.f32.partialorder %v874, 0.0
        %vm883 = vcmp.gt.f32.partialorder %v875, 0.0
        %vm884 = vcmp.gt.f32.partialorder %v876, 0.0
        %vm885 = vcmp.gt.f32.partialorder %v877, 0.0
        %vm886 = vcmp.gt.f32.partialorder %v878, 0.0
        %vm887 = vcmp.gt.f32.partialorder %v879, 0.0
        %v888 = vmul.f32 %v872, 0.2
        %v889 = vmul.f32 %v873, 0.2
        %v890 = vmul.f32 %v874, 0.2
        %v891 = vmul.f32 %v875, 0.2
        %v892 = vmul.f32 %v876, 0.2
        %v893 = vmul.f32 %v877, 0.2
        %v894 = vmul.f32 %v878, 0.2
        %v895 = vmul.f32 %v879, 0.2
        %v896 = vsel %vm880, %v872, %v888
        %v897 = vsel %vm881, %v873, %v889
        %v898 = vsel %vm882, %v874, %v890
        %v899 = vsel %vm883, %v875, %v891
        %v900 = vsel %vm884, %v876, %v892
        %v901 = vsel %vm885, %v877, %v893
        %v902 = vsel %vm886, %v878, %v894
        %v903 = vsel %vm887, %v879, %v895
        %v904 = vlaneseq
        %v905 = vshrl.u32 %v904, 7
        %v906 = vsub.s32 5, %v905
        %v907 = vrot.slane %v290, %v906
        %v908 = vmul.f32 %v818, %v907
        %v909 = vmul.f32 %v819, %v907
        %v910 = vmul.f32 %v820, %v907
        %v911 = vmul.f32 %v821, %v907
        %v912 = vmul.f32 %v822, %v907
        %v913 = vmul.f32 %v823, %v907
        %v914 = vmul.f32 %v824, %v907
        %v915 = vmul.f32 %v825, %v907
        %v916 = vsel %vm373, %v908, 0.0
        %917 = vadd.xlane.f32.xlu0 %v916
        %v918 = vpop.xlane.xlu0 %917
        %v919 = vsel %vm373, %v909, 0.0
        %920 = vadd.xlane.f32.xlu0 %v919
        %v921 = vpop.xlane.xlu0 %920
        %v922 = vsel %vm373, %v910, 0.0
        %923 = vadd.xlane.f32.xlu0 %v922
        %v924 = vpop.xlane.xlu0 %923
        %v925 = vsel %vm373, %v911, 0.0
        %926 = vadd.xlane.f32.xlu0 %v925
        %v927 = vpop.xlane.xlu0 %926
        %v928 = vsel %vm373, %v912, 0.0
        %929 = vadd.xlane.f32.xlu0 %v928
        %v930 = vpop.xlane.xlu0 %929
        %v931 = vsel %vm373, %v913, 0.0
        %932 = vadd.xlane.f32.xlu0 %v931
        %v933 = vpop.xlane.xlu0 %932
        %v934 = vsel %vm373, %v914, 0.0
        %935 = vadd.xlane.f32.xlu0 %v934
        %v936 = vpop.xlane.xlu0 %935
        %v937 = vsel %vm373, %v915, 0.0
        %938 = vadd.xlane.f32.xlu0 %v937
        %v939 = vpop.xlane.xlu0 %938
        %940 = vrot.lane.b32.xlu0 %v868, 127
        %v941 = vpop.permute.xlu0 %940
        %s942 = vtos %v941
        %v943 = vstv %s942
        %v945 = vadd.f32 %v918, %v943
        %v946 = vadd.f32 %v921, %v943
        %v947 = vadd.f32 %v924, %v943
        %v948 = vadd.f32 %v927, %v943
        %v949 = vadd.f32 %v930, %v943
        %v950 = vadd.f32 %v933, %v943
        %v951 = vadd.f32 %v936, %v943
        %v952 = vadd.f32 %v939, %v943
        %vm953 = vcmp.gt.f32.partialorder %v945, 0.0
        %vm954 = vcmp.gt.f32.partialorder %v946, 0.0
        %vm955 = vcmp.gt.f32.partialorder %v947, 0.0
        %vm956 = vcmp.gt.f32.partialorder %v948, 0.0
        %vm957 = vcmp.gt.f32.partialorder %v949, 0.0
        %vm958 = vcmp.gt.f32.partialorder %v950, 0.0
        %vm959 = vcmp.gt.f32.partialorder %v951, 0.0
        %vm960 = vcmp.gt.f32.partialorder %v952, 0.0
        %v961 = vmul.f32 %v945, 0.2
        %v962 = vmul.f32 %v946, 0.2
        %v963 = vmul.f32 %v947, 0.2
        %v964 = vmul.f32 %v948, 0.2
        %v965 = vmul.f32 %v949, 0.2
        %v966 = vmul.f32 %v950, 0.2
        %v967 = vmul.f32 %v951, 0.2
        %v968 = vmul.f32 %v952, 0.2
        %v969 = vsel %vm953, %v945, %v961
        %v970 = vsel %vm954, %v946, %v962
        %v971 = vsel %vm955, %v947, %v963
        %v972 = vsel %vm956, %v948, %v964
        %v973 = vsel %vm957, %v949, %v965
        %v974 = vsel %vm958, %v950, %v966
        %v975 = vsel %vm959, %v951, %v967
        %v976 = vsel %vm960, %v952, %v968
        %v985 = vlaneseq
        %v986 = vshrl.u32 %v985, 7
        %v987 = vsub.s32 %v829, %v986
        %v988 = vrot.slane %v896, %v987
        %v989 = vlaneseq
        %v990 = vshrl.u32 %v989, 7
        %v991 = vsub.s32 %v829, %v990
        %v992 = vrot.slane %v897, %v991
        %v993 = vlaneseq
        %v994 = vshrl.u32 %v993, 7
        %v995 = vsub.s32 %v829, %v994
        %v996 = vrot.slane %v898, %v995
        %v997 = vlaneseq
        %v998 = vshrl.u32 %v997, 7
        %v999 = vsub.s32 %v829, %v998
        %v1000 = vrot.slane %v899, %v999
        %v1001 = vlaneseq
        %v1002 = vshrl.u32 %v1001, 7
        %v1003 = vsub.s32 %v829, %v1002
        %v1004 = vrot.slane %v900, %v1003
        %v1005 = vlaneseq
        %v1006 = vshrl.u32 %v1005, 7
        %v1007 = vsub.s32 %v829, %v1006
        %v1008 = vrot.slane %v901, %v1007
        %v1009 = vlaneseq
        %v1010 = vshrl.u32 %v1009, 7
        %v1011 = vsub.s32 %v829, %v1010
        %v1012 = vrot.slane %v902, %v1011
        %v1013 = vlaneseq
        %v1014 = vshrl.u32 %v1013, 7
        %v1015 = vsub.s32 %v829, %v1014
        %v1016 = vrot.slane %v903, %v1015
        %vm1017 = vcmask 1041409
        %v1018 = vsel %vm1017, %v992, %v988
        %vm1019 = vcmask 1042434
        %v1020 = vsel %vm1019, %v996, %v1018
        %vm1021 = vcmask 1043459
        %v1022 = vsel %vm1021, %v1000, %v1020
        %vm1023 = vcmask 1044484
        %v1024 = vsel %vm1023, %v1004, %v1022
        %vm1025 = vcmask 1045509
        %v1026 = vsel %vm1025, %v1008, %v1024
        %vm1027 = vcmask 1046534
        %v1028 = vsel %vm1027, %v1012, %v1026
        %vm1029 = vcmask 1047559
        %v1030 = vsel %vm1029, %v1016, %v1028
        %v1032 = vsel %vm830, -1e+30, %v1030
        %vm1033 = vcmask 64512
        %v1034 = vsel %vm1033, %v1032, -inf
        %v1035 = vrot.slane %v1034, 4
        %v1036 = vmax.f32 %v1034, %v1035
        %v1037 = vrot.slane %v1036, 2
        %v1038 = vmax.f32 %v1036, %v1037
        %v1039 = vrot.slane %v1038, 1
        %v1040 = vmax.f32 %v1038, %v1039
        %v1041 = vsub.f32 %v1032, %v1040
        %v1042 = vmul.f32 %v1041, 1.442695
        %v1043 = vpow.pop %v1042
        %v1044 = vsel %vm1033, %v1043, 0.0
        %v1045 = vrot.slane %v1044, 4
        %v1046 = vadd.f32 %v1044, %v1045
        %v1047 = vrot.slane %v1046, 2
        %v1048 = vadd.f32 %v1046, %v1047
        %v1049 = vrot.slane %v1048, 1
        %v1050 = vadd.f32 %v1048, %v1049
        %v1051 = vrcp.pop %v1050
        %v1052 = vmul.f32 %v1043, %v1051
        %v1061 = vlaneseq
        %v1062 = vshrl.u32 %v1061, 7
        %v1063 = vsub.s32 %v829, %v1062
        %v1064 = vrot.slane %v969, %v1063
        %v1065 = vlaneseq
        %v1066 = vshrl.u32 %v1065, 7
        %v1067 = vsub.s32 %v829, %v1066
        %v1068 = vrot.slane %v970, %v1067
        %v1069 = vlaneseq
        %v1070 = vshrl.u32 %v1069, 7
        %v1071 = vsub.s32 %v829, %v1070
        %v1072 = vrot.slane %v971, %v1071
        %v1073 = vlaneseq
        %v1074 = vshrl.u32 %v1073, 7
        %v1075 = vsub.s32 %v829, %v1074
        %v1076 = vrot.slane %v972, %v1075
        %v1077 = vlaneseq
        %v1078 = vshrl.u32 %v1077, 7
        %v1079 = vsub.s32 %v829, %v1078
        %v1080 = vrot.slane %v973, %v1079
        %v1081 = vlaneseq
        %v1082 = vshrl.u32 %v1081, 7
        %v1083 = vsub.s32 %v829, %v1082
        %v1084 = vrot.slane %v974, %v1083
        %v1085 = vlaneseq
        %v1086 = vshrl.u32 %v1085, 7
        %v1087 = vsub.s32 %v829, %v1086
        %v1088 = vrot.slane %v975, %v1087
        %v1089 = vlaneseq
        %v1090 = vshrl.u32 %v1089, 7
        %v1091 = vsub.s32 %v829, %v1090
        %v1092 = vrot.slane %v976, %v1091
        %v1093 = vsel %vm1017, %v1068, %v1064
        %v1094 = vsel %vm1019, %v1072, %v1093
        %v1095 = vsel %vm1021, %v1076, %v1094
        %v1096 = vsel %vm1023, %v1080, %v1095
        %v1097 = vsel %vm1025, %v1084, %v1096
        %v1098 = vsel %vm1027, %v1088, %v1097
        %v1099 = vsel %vm1029, %v1092, %v1098
        %v1101 = vsel %vm830, -1e+30, %v1099
        %v1102 = vsel %vm1033, %v1101, -inf
        %v1103 = vrot.slane %v1102, 4
        %v1104 = vmax.f32 %v1102, %v1103
        %v1105 = vrot.slane %v1104, 2
        %v1106 = vmax.f32 %v1104, %v1105
        %v1107 = vrot.slane %v1106, 1
        %v1108 = vmax.f32 %v1106, %v1107
        %v1109 = vsub.f32 %v1101, %v1108
        %v1110 = vmul.f32 %v1109, 1.442695
        %v1111 = vpow.pop %v1110
        %v1112 = vsel %vm1033, %v1111, 0.0
        %v1113 = vrot.slane %v1112, 4
        %v1114 = vadd.f32 %v1112, %v1113
        %v1115 = vrot.slane %v1114, 2
        %v1116 = vadd.f32 %v1114, %v1115
        %v1117 = vrot.slane %v1116, 1
        %v1118 = vadd.f32 %v1116, %v1117
        %v1119 = vrcp.pop %v1118
        %v1120 = vmul.f32 %v1111, %v1119
        %v1121 = vlaneseq
        %v1122 = vshrl.u32 %v1121, 7
        %v1123 = vsub.s32 0, %v1122
        %v1124 = vrot.slane %v1052, %v1123
        %1126 = vbcast.lane.b32.xlu0 %v1124, 256
        %v1127 = vpop.permute.xlu0 %1126
        %v1128 = vlaneseq
        %v1129 = vshrl.u32 %v1128, 7
        %v1130 = vsub.s32 1, %v1129
        %v1131 = vrot.slane %v1052, %v1130
        %1133 = vbcast.lane.b32.xlu0 %v1131, 256
        %v1134 = vpop.permute.xlu0 %1133
        %v1135 = vlaneseq
        %v1136 = vshrl.u32 %v1135, 7
        %v1137 = vsub.s32 2, %v1136
        %v1138 = vrot.slane %v1052, %v1137
        %1140 = vbcast.lane.b32.xlu0 %v1138, 256
        %v1141 = vpop.permute.xlu0 %1140
        %v1142 = vlaneseq
        %v1143 = vshrl.u32 %v1142, 7
        %v1144 = vsub.s32 3, %v1143
        %v1145 = vrot.slane %v1052, %v1144
        %1147 = vbcast.lane.b32.xlu0 %v1145, 256
        %v1148 = vpop.permute.xlu0 %1147
        %v1149 = vlaneseq
        %v1150 = vshrl.u32 %v1149, 7
        %v1151 = vsub.s32 4, %v1150
        %v1152 = vrot.slane %v1052, %v1151
        %1154 = vbcast.lane.b32.xlu0 %v1152, 256
        %v1155 = vpop.permute.xlu0 %1154
        %v1156 = vlaneseq
        %v1157 = vshrl.u32 %v1156, 7
        %v1158 = vsub.s32 5, %v1157
        %v1159 = vrot.slane %v1052, %v1158
        %1161 = vbcast.lane.b32.xlu0 %v1159, 256
        %v1162 = vpop.permute.xlu0 %1161
        %v1163 = vlaneseq
        %v1164 = vshrl.u32 %v1163, 7
        %v1165 = vsub.s32 6, %v1164
        %v1166 = vrot.slane %v1052, %v1165
        %1168 = vbcast.lane.b32.xlu0 %v1166, 256
        %v1169 = vpop.permute.xlu0 %1168
        %v1170 = vlaneseq
        %v1171 = vshrl.u32 %v1170, 7
        %v1172 = vsub.s32 7, %v1171
        %v1173 = vrot.slane %v1052, %v1172
        %1175 = vbcast.lane.b32.xlu0 %v1173, 256
        %v1176 = vpop.permute.xlu0 %1175
        %v1177 = vcombine.high %v268, %v268
        %v1179 = vunpack.c.l.s4 1966171168
        %v1180 = vunpack.c.0.s8 %v1179
        %v1181 = vlaneseq
        %v1182 = vshrl.u32 %v1181, 7
        %v1183 = vsub.s32 %v1180, %v1182
        %v1184 = vrot.slane %v268, %v1183
        %v1186 = vunpack.c.l.s4 1966171168
        %v1187 = vunpack.c.0.s8 %v1186
        %v1188 = vlaneseq
        %v1189 = vshrl.u32 %v1188, 7
        %v1190 = vsub.s32 %v1187, %v1189
        %v1191 = vrot.slane %v1177, %v1190
        %v1192 = vcombine.high %v1184, %v1184
        %v1193 = vcombine.high %v1191, %v1191
        %v1195 = vunpack.c.l.s4 1966171168
        %v1196 = vunpack.c.0.s8 %v1195
        %v1197 = vlaneseq
        %v1198 = vshrl.u32 %v1197, 7
        %v1199 = vsub.s32 %v1196, %v1198
        %v1200 = vrot.slane %v1184, %v1199
        %v1202 = vunpack.c.l.s4 1966171168
        %v1203 = vunpack.c.0.s8 %v1202
        %v1204 = vlaneseq
        %v1205 = vshrl.u32 %v1204, 7
        %v1206 = vsub.s32 %v1203, %v1205
        %v1207 = vrot.slane %v1191, %v1206
        %v1209 = vunpack.c.l.s4 1966171168
        %v1210 = vunpack.c.0.s8 %v1209
        %v1211 = vlaneseq
        %v1212 = vshrl.u32 %v1211, 7
        %v1213 = vsub.s32 %v1210, %v1212
        %v1214 = vrot.slane %v1192, %v1213
        %v1216 = vunpack.c.l.s4 1966171168
        %v1217 = vunpack.c.0.s8 %v1216
        %v1218 = vlaneseq
        %v1219 = vshrl.u32 %v1218, 7
        %v1220 = vsub.s32 %v1217, %v1219
        %v1221 = vrot.slane %v1193, %v1220
        %v1222 = vcombine.high %v1200, %v1200
        %v1223 = vcombine.high %v1207, %v1207
        %v1224 = vcombine.high %v1214, %v1214
        %v1225 = vcombine.high %v1221, %v1221
        %v1226 = vlaneseq
        %v1227 = vshrl.u32 %v1226, 7
        %v1228 = vsub.s32 0, %v1227
        %v1229 = vrot.slane %v1200, %v1228
        %v1230 = vlaneseq
        %v1231 = vshrl.u32 %v1230, 7
        %v1232 = vsub.s32 0, %v1231
        %v1233 = vrot.slane %v1214, %v1232
        %v1234 = vlaneseq
        %v1235 = vshrl.u32 %v1234, 7
        %v1236 = vsub.s32 0, %v1235
        %v1237 = vrot.slane %v1222, %v1236
        %v1238 = vlaneseq
        %v1239 = vshrl.u32 %v1238, 7
        %v1240 = vsub.s32 0, %v1239
        %v1241 = vrot.slane %v1224, %v1240
        %v1242 = vlaneseq
        %v1243 = vshrl.u32 %v1242, 7
        %v1244 = vsub.s32 0, %v1243
        %v1245 = vrot.slane %v1207, %v1244
        %v1246 = vlaneseq
        %v1247 = vshrl.u32 %v1246, 7
        %v1248 = vsub.s32 0, %v1247
        %v1249 = vrot.slane %v1221, %v1248
        %v1250 = vlaneseq
        %v1251 = vshrl.u32 %v1250, 7
        %v1252 = vsub.s32 0, %v1251
        %v1253 = vrot.slane %v1223, %v1252
        %v1254 = vlaneseq
        %v1255 = vshrl.u32 %v1254, 7
        %v1256 = vsub.s32 0, %v1255
        %v1257 = vrot.slane %v1225, %v1256
        %v1266 = vadd.f32 %v1229, %v624
        %v1267 = vadd.f32 %v1233, %v625
        %v1268 = vadd.f32 %v1237, %v626
        %v1269 = vadd.f32 %v1241, %v627
        %v1270 = vadd.f32 %v1245, %v628
        %v1271 = vadd.f32 %v1249, %v629
        %v1272 = vadd.f32 %v1253, %v630
        %v1273 = vadd.f32 %v1257, %v631
        %v1274 = vmul.f32 %v1127, %v1266
        %v1275 = vmul.f32 %v1134, %v1267
        %v1276 = vmul.f32 %v1141, %v1268
        %v1277 = vmul.f32 %v1148, %v1269
        %v1278 = vmul.f32 %v1155, %v1270
        %v1279 = vmul.f32 %v1162, %v1271
        %v1280 = vmul.f32 %v1169, %v1272
        %v1281 = vmul.f32 %v1176, %v1273
        %v1282 = vsel %vm291, %v1274, 0.0
        %v1283 = vsel %vm291, %v1275, 0.0
        %v1284 = vadd.f32 %v1282, %v1283
        %v1285 = vsel %vm291, %v1276, 0.0
        %v1286 = vadd.f32 %v1284, %v1285
        %v1287 = vsel %vm291, %v1277, 0.0
        %v1288 = vadd.f32 %v1286, %v1287
        %v1289 = vsel %vm291, %v1278, 0.0
        %v1290 = vadd.f32 %v1288, %v1289
        %v1291 = vsel %vm291, %v1279, 0.0
        %v1292 = vadd.f32 %v1290, %v1291
        %v1293 = vsel %vm291, %v1280, 0.0
        %v1294 = vadd.f32 %v1292, %v1293
        %v1295 = vsel %vm291, %v1281, 0.0
        %v1296 = vadd.f32 %v1294, %v1295
        %v1297 = vlaneseq
        %v1298 = vshrl.u32 %v1297, 7
        %v1299 = vsub.s32 0, %v1298
        %v1300 = vrot.slane %v1120, %v1299
        %1302 = vbcast.lane.b32.xlu0 %v1300, 256
        %v1303 = vpop.permute.xlu0 %1302
        %v1304 = vlaneseq
        %v1305 = vshrl.u32 %v1304, 7
        %v1306 = vsub.s32 1, %v1305
        %v1307 = vrot.slane %v1120, %v1306
        %1309 = vbcast.lane.b32.xlu0 %v1307, 256
        %v1310 = vpop.permute.xlu0 %1309
        %v1311 = vlaneseq
        %v1312 = vshrl.u32 %v1311, 7
        %v1313 = vsub.s32 2, %v1312
        %v1314 = vrot.slane %v1120, %v1313
        %1316 = vbcast.lane.b32.xlu0 %v1314, 256
        %v1317 = vpop.permute.xlu0 %1316
        %v1318 = vlaneseq
        %v1319 = vshrl.u32 %v1318, 7
        %v1320 = vsub.s32 3, %v1319
        %v1321 = vrot.slane %v1120, %v1320
        %1323 = vbcast.lane.b32.xlu0 %v1321, 256
        %v1324 = vpop.permute.xlu0 %1323
        %v1325 = vlaneseq
        %v1326 = vshrl.u32 %v1325, 7
        %v1327 = vsub.s32 4, %v1326
        %v1328 = vrot.slane %v1120, %v1327
        %1330 = vbcast.lane.b32.xlu0 %v1328, 256
        %v1331 = vpop.permute.xlu0 %1330
        %v1332 = vlaneseq
        %v1333 = vshrl.u32 %v1332, 7
        %v1334 = vsub.s32 5, %v1333
        %v1335 = vrot.slane %v1120, %v1334
        %1337 = vbcast.lane.b32.xlu0 %v1335, 256
        %v1338 = vpop.permute.xlu0 %1337
        %v1339 = vlaneseq
        %v1340 = vshrl.u32 %v1339, 7
        %v1341 = vsub.s32 6, %v1340
        %v1342 = vrot.slane %v1120, %v1341
        %1344 = vbcast.lane.b32.xlu0 %v1342, 256
        %v1345 = vpop.permute.xlu0 %1344
        %v1346 = vlaneseq
        %v1347 = vshrl.u32 %v1346, 7
        %v1348 = vsub.s32 7, %v1347
        %v1349 = vrot.slane %v1120, %v1348
        %1351 = vbcast.lane.b32.xlu0 %v1349, 256
        %v1352 = vpop.permute.xlu0 %1351
        %v1353 = vcombine.high %v269, %v269
        %v1355 = vunpack.c.l.s4 1966171168
        %v1356 = vunpack.c.0.s8 %v1355
        %v1357 = vlaneseq
        %v1358 = vshrl.u32 %v1357, 7
        %v1359 = vsub.s32 %v1356, %v1358
        %v1360 = vrot.slane %v269, %v1359
        %v1362 = vunpack.c.l.s4 1966171168
        %v1363 = vunpack.c.0.s8 %v1362
        %v1364 = vlaneseq
        %v1365 = vshrl.u32 %v1364, 7
        %v1366 = vsub.s32 %v1363, %v1365
        %v1367 = vrot.slane %v1353, %v1366
        %v1368 = vcombine.high %v1360, %v1360
        %v1369 = vcombine.high %v1367, %v1367
        %v1371 = vunpack.c.l.s4 1966171168
        %v1372 = vunpack.c.0.s8 %v1371
        %v1373 = vlaneseq
        %v1374 = vshrl.u32 %v1373, 7
        %v1375 = vsub.s32 %v1372, %v1374
        %v1376 = vrot.slane %v1360, %v1375
        %v1378 = vunpack.c.l.s4 1966171168
        %v1379 = vunpack.c.0.s8 %v1378
        %v1380 = vlaneseq
        %v1381 = vshrl.u32 %v1380, 7
        %v1382 = vsub.s32 %v1379, %v1381
        %v1383 = vrot.slane %v1367, %v1382
        %v1385 = vunpack.c.l.s4 1966171168
        %v1386 = vunpack.c.0.s8 %v1385
        %v1387 = vlaneseq
        %v1388 = vshrl.u32 %v1387, 7
        %v1389 = vsub.s32 %v1386, %v1388
        %v1390 = vrot.slane %v1368, %v1389
        %v1392 = vunpack.c.l.s4 1966171168
        %v1393 = vunpack.c.0.s8 %v1392
        %v1394 = vlaneseq
        %v1395 = vshrl.u32 %v1394, 7
        %v1396 = vsub.s32 %v1393, %v1395
        %v1397 = vrot.slane %v1369, %v1396
        %v1398 = vcombine.high %v1376, %v1376
        %v1399 = vcombine.high %v1383, %v1383
        %v1400 = vcombine.high %v1390, %v1390
        %v1401 = vcombine.high %v1397, %v1397
        %v1402 = vlaneseq
        %v1403 = vshrl.u32 %v1402, 7
        %v1404 = vsub.s32 0, %v1403
        %v1405 = vrot.slane %v1376, %v1404
        %v1406 = vlaneseq
        %v1407 = vshrl.u32 %v1406, 7
        %v1408 = vsub.s32 0, %v1407
        %v1409 = vrot.slane %v1390, %v1408
        %v1410 = vlaneseq
        %v1411 = vshrl.u32 %v1410, 7
        %v1412 = vsub.s32 0, %v1411
        %v1413 = vrot.slane %v1398, %v1412
        %v1414 = vlaneseq
        %v1415 = vshrl.u32 %v1414, 7
        %v1416 = vsub.s32 0, %v1415
        %v1417 = vrot.slane %v1400, %v1416
        %v1418 = vlaneseq
        %v1419 = vshrl.u32 %v1418, 7
        %v1420 = vsub.s32 0, %v1419
        %v1421 = vrot.slane %v1383, %v1420
        %v1422 = vlaneseq
        %v1423 = vshrl.u32 %v1422, 7
        %v1424 = vsub.s32 0, %v1423
        %v1425 = vrot.slane %v1397, %v1424
        %v1426 = vlaneseq
        %v1427 = vshrl.u32 %v1426, 7
        %v1428 = vsub.s32 0, %v1427
        %v1429 = vrot.slane %v1399, %v1428
        %v1430 = vlaneseq
        %v1431 = vshrl.u32 %v1430, 7
        %v1432 = vsub.s32 0, %v1431
        %v1433 = vrot.slane %v1401, %v1432
        %v1442 = vmul.f32 %v1303, %v1405
        %v1443 = vmul.f32 %v1310, %v1409
        %v1444 = vmul.f32 %v1317, %v1413
        %v1445 = vmul.f32 %v1324, %v1417
        %v1446 = vmul.f32 %v1331, %v1421
        %v1447 = vmul.f32 %v1338, %v1425
        %v1448 = vmul.f32 %v1345, %v1429
        %v1449 = vmul.f32 %v1352, %v1433
        %v1450 = vsel %vm373, %v1442, 0.0
        %v1451 = vsel %vm373, %v1443, 0.0
        %v1452 = vadd.f32 %v1450, %v1451
        %v1453 = vsel %vm373, %v1444, 0.0
        %v1454 = vadd.f32 %v1452, %v1453
        %v1455 = vsel %vm373, %v1445, 0.0
        %v1456 = vadd.f32 %v1454, %v1455
        %v1457 = vsel %vm373, %v1446, 0.0
        %v1458 = vadd.f32 %v1456, %v1457
        %v1459 = vsel %vm373, %v1447, 0.0
        %v1460 = vadd.f32 %v1458, %v1459
        %v1461 = vsel %vm373, %v1448, 0.0
        %v1462 = vadd.f32 %v1460, %v1461
        %v1463 = vsel %vm373, %v1449, 0.0
        %v1464 = vadd.f32 %v1462, %v1463
        %1466 = vrot.lane.b32.xlu0 %v1296, 32
        %v1467 = vpop.permute.xlu0 %1466
        %v1469 = vsel %vm291, %v268, %v1467
        %v1470 = vlaneseq
        %v1471 = vshrl.u32 %v1470, 7
        %v1472 = vsub.s32 2, %v1471
        %v1473 = vrot.slane %v290, %v1472
        %vm1474 = vcmask 523264
        %v1476 = vsel %vm1474, %v1469, 0
        %1478 = vmatprep.subr.mxu0 0.0
        %1479 = vmatpush1.msra.mxu0 %v278
        %1480 = vmatprep.subr.mxu0 0.0
        %1481 = vmatpush1.msra.mxu0 %v279
        %1482 = vmatprep.subr.mxu0 0.0
        %1483 = vmatpush1.msra.mxu0 %v280
        %1484 = vmatprep.subr.mxu0 0.0
        %1485 = vmatpush1.msra.mxu0 %v281
        %1486 = vmatprep.subr.mxu0 0.0
        %1487 = vmatpush1.msra.mxu0 %v282
        %1488 = vmatprep.subr.mxu0 0.0
        %1489 = vmatpush1.msra.mxu0 %v283
        %1490 = vmatprep.subr.mxu0 0.0
        %1491 = vmatpush1.msra.mxu0 %v284
        %1492 = vmatprep.subr.mxu0 0.0
        %1493 = vmatpush1.msra.mxu0 %v285
        %1494 = vmatprep.subr.mxu0 0.0
        %1495 = vmatpush1.msra.mxu0 0.0
        %1496 = vmatprep.subr.mxu0 0.0
        %1497 = vmatpush1.msra.mxu0 0.0
        %1498 = vmatprep.subr.mxu0 0.0
        %1499 = vmatpush1.msra.mxu0 0.0
        %1500 = vmatprep.subr.mxu0 0.0
        %1501 = vmatpush1.msra.mxu0 0.0
        %1502 = vmatprep.subr.mxu0 0.0
        %1503 = vmatpush1.msra.mxu0 0.0
        %1504 = vmatprep.subr.mxu0 0.0
        %1505 = vmatpush1.msra.mxu0 0.0
        %1506 = vmatprep.subr.mxu0 0.0
        %1507 = vmatpush1.msra.mxu0 0.0
        %1508 = vmatprep.subr.mxu0 0.0
        %1509 = vmatpush1.msra.mxu0 0.0
        %1510 = vmatprep.subr.mxu0 0.0
        %1511 = vmatpush1.msra.mxu0 0.0
        %1512 = vmatprep.subr.mxu0 0.0
        %1513 = vmatpush1.msra.mxu0 0.0
        %1514 = vmatprep.subr.mxu0 0.0
        %1515 = vmatpush1.msra.mxu0 0.0
        %1516 = vmatprep.subr.mxu0 0.0
        %1517 = vmatpush1.msra.mxu0 0.0
        %1518 = vmatprep.subr.mxu0 0.0
        %1519 = vmatpush1.msra.mxu0 0.0
        %1520 = vmatprep.subr.mxu0 0.0
        %1521 = vmatpush1.msra.mxu0 0.0
        %1522 = vmatprep.subr.mxu0 0.0
        %1523 = vmatpush1.msra.mxu0 0.0
        %1524 = vmatprep.subr.mxu0 0.0
        %1525 = vmatpush1.msra.mxu0 0.0
        %1526 = vmatprep.subr.mxu0 0.0
        %1527 = vmatpush1.msra.mxu0 0.0
        %1528 = vmatprep.subr.mxu0 0.0
        %1529 = vmatpush1.msra.mxu0 0.0
        %1530 = vmatprep.subr.mxu0 0.0
        %1531 = vmatpush1.msra.mxu0 0.0
        %1532 = vmatprep.subr.mxu0 0.0
        %1533 = vmatpush1.msra.mxu0 0.0
        %1534 = vmatprep.subr.mxu0 0.0
        %1535 = vmatpush1.msra.mxu0 0.0
        %1536 = vmatprep.subr.mxu0 0.0
        %1537 = vmatpush1.msra.mxu0 0.0
        %1538 = vmatprep.subr.mxu0 0.0
        %1539 = vmatpush1.msra.mxu0 0.0
        %1540 = vmatprep.subr.mxu0 0.0
        %1541 = vmatpush1.msra.mxu0 0.0
        %1542 = vmatprep.mubr.f32.mxu0 0.0
        %1543 = vmatmul.mubr.f32.gmra.mrb[0].mxu0 %v1476
        %v1544 = vpop.f32.mrb[0].mxu0
        %v1545 = vadd.f32 %v1473, %v1544
        %v1546 = vpop.f32.mrb[0].mxu0
        %1547 = vdwg.mxu0
        %v1548 = vmax.f32 %v1545, 0.0
        %1549 = vst.msk [vmem:[%s247] sm:$0xff] %vm291, %v1548
        %1551 = vrot.lane.b32.xlu0 %v1464, 16
        %v1552 = vpop.permute.xlu0 %1551
        %v1554 = vsel %vm373, %v269, %v1552
        %v1555 = vlaneseq
        %v1556 = vshrl.u32 %v1555, 7
        %v1557 = vsub.s32 3, %v1556
        %v1558 = vrot.slane %v290, %v1557
        %v1560 = vsel %vm291, %v1554, 0
        %1562 = vmatprep.subr.mxu0 0.0
        %1563 = vmatpush1.msra.mxu0 %v286
        %1564 = vmatprep.subr.mxu0 0.0
        %1565 = vmatpush1.msra.mxu0 %v287
        %1566 = vmatprep.subr.mxu0 0.0
        %1567 = vmatpush1.msra.mxu0 %v288
        %1568 = vmatprep.subr.mxu0 0.0
        %1569 = vmatpush1.msra.mxu0 %v289
        %1570 = vmatprep.subr.mxu0 0.0
        %1571 = vmatpush1.msra.mxu0 0.0
        %1572 = vmatprep.subr.mxu0 0.0
        %1573 = vmatpush1.msra.mxu0 0.0
        %1574 = vmatprep.subr.mxu0 0.0
        %1575 = vmatpush1.msra.mxu0 0.0
        %1576 = vmatprep.subr.mxu0 0.0
        %1577 = vmatpush1.msra.mxu0 0.0
        %1578 = vmatprep.subr.mxu0 0.0
        %1579 = vmatpush1.msra.mxu0 0.0
        %1580 = vmatprep.subr.mxu0 0.0
        %1581 = vmatpush1.msra.mxu0 0.0
        %1582 = vmatprep.subr.mxu0 0.0
        %1583 = vmatpush1.msra.mxu0 0.0
        %1584 = vmatprep.subr.mxu0 0.0
        %1585 = vmatpush1.msra.mxu0 0.0
        %1586 = vmatprep.subr.mxu0 0.0
        %1587 = vmatpush1.msra.mxu0 0.0
        %1588 = vmatprep.subr.mxu0 0.0
        %1589 = vmatpush1.msra.mxu0 0.0
        %1590 = vmatprep.subr.mxu0 0.0
        %1591 = vmatpush1.msra.mxu0 0.0
        %1592 = vmatprep.subr.mxu0 0.0
        %1593 = vmatpush1.msra.mxu0 0.0
        %1594 = vmatprep.subr.mxu0 0.0
        %1595 = vmatpush1.msra.mxu0 0.0
        %1596 = vmatprep.subr.mxu0 0.0
        %1597 = vmatpush1.msra.mxu0 0.0
        %1598 = vmatprep.subr.mxu0 0.0
        %1599 = vmatpush1.msra.mxu0 0.0
        %1600 = vmatprep.subr.mxu0 0.0
        %1601 = vmatpush1.msra.mxu0 0.0
        %1602 = vmatprep.subr.mxu0 0.0
        %1603 = vmatpush1.msra.mxu0 0.0
        %1604 = vmatprep.subr.mxu0 0.0
        %1605 = vmatpush1.msra.mxu0 0.0
        %1606 = vmatprep.subr.mxu0 0.0
        %1607 = vmatpush1.msra.mxu0 0.0
        %1608 = vmatprep.subr.mxu0 0.0
        %1609 = vmatpush1.msra.mxu0 0.0
        %1610 = vmatprep.subr.mxu0 0.0
        %1611 = vmatpush1.msra.mxu0 0.0
        %1612 = vmatprep.subr.mxu0 0.0
        %1613 = vmatpush1.msra.mxu0 0.0
        %1614 = vmatprep.subr.mxu0 0.0
        %1615 = vmatpush1.msra.mxu0 0.0
        %1616 = vmatprep.subr.mxu0 0.0
        %1617 = vmatpush1.msra.mxu0 0.0
        %1618 = vmatprep.subr.mxu0 0.0
        %1619 = vmatpush1.msra.mxu0 0.0
        %1620 = vmatprep.subr.mxu0 0.0
        %1621 = vmatpush1.msra.mxu0 0.0
        %1622 = vmatprep.subr.mxu0 0.0
        %1623 = vmatpush1.msra.mxu0 0.0
        %1624 = vmatprep.subr.mxu0 0.0
        %1625 = vmatpush1.msra.mxu0 0.0
        %1626 = vmatprep.mubr.f32.mxu0 0.0
        %1627 = vmatmul.mubr.f32.gmra.mrb[0].mxu0 %v1560
        %v1628 = vpop.f32.mrb[0].mxu0
        %v1629 = vadd.f32 %v1558, %v1628
        %v1630 = vpop.f32.mrb[0].mxu0
        %1631 = vdwg.mxu0
        %v1632 = vmax.f32 %v1629, 0.0
        %1633 = vst.msk [vmem:[%s254] sm:$0xff] %vm373, %v1632
        %s1634 = sand.u32 %s130, 1
        %s1635 = scalar_lea.sflag [#allocation3], %s1634
        %s1636 = sand.u32 %s130, 1
        %s1637 = smul.addr %s1636, 8
        %s1638 = scalar_lea.vmem [#allocation2], %s1637
        %s1639 = sand.u32 %s156, 1
        %s1640 = scalar_lea.sflag [#allocation5], %s1639
        %s1641 = sand.u32 %s156, 1
        %s1642 = smul.addr %s1641, 8
        %s1643 = scalar_lea.vmem [#allocation4], %s1642
        // Predicated region
        $region37: #{tpu_custom_call.1} parent=35 // pred_check
          %p1644 = pneg %p140
        $region38: #{tpu_custom_call.1} parent=35 // pred_check_branch
          %1646 = sbr.rel (%p1644) target = $region40
        $region39: #{tpu_custom_call.1} parent=35 // pred_region
          %s1648 = ssub.s32 128, 128
          %1649 = vsyncadd %s1635, %s1648
          %s1650 = smul.addr %s23, 128
          %s1651 = scalar_lea.hbm %s4, %s1650
          %s1653 = sshll.u32 %s1638, 4
          %s1654 = int_to_ptr.vmem [resolvable:$true] %s1653
          %1656 = dma.vmem_to_hbm [thread:$0]  %s1654, 128, %s1651, %s1635
        $region40: #{tpu_custom_call.1} parent=35 // pred_fallthru
          _
        // Predicated region
        $region41: #{tpu_custom_call.1} parent=35 // pred_check
          %p1657 = pneg %p166
        $region42: #{tpu_custom_call.1} parent=35 // pred_check_branch
          %1659 = sbr.rel (%p1657) target = $region44
        $region43: #{tpu_custom_call.1} parent=35 // pred_region
          %s1661 = ssub.s32 128, 128
          %1662 = vsyncadd %s1640, %s1661
          %s1663 = smul.addr %s23, 128
          %s1664 = scalar_lea.hbm %s5, %s1663
          %s1666 = sshll.u32 %s1643, 4
          %s1667 = int_to_ptr.vmem [resolvable:$true] %s1666
          %1669 = dma.vmem_to_hbm [thread:$0]  %s1667, 128, %s1664, %s1640
        $region44: #{tpu_custom_call.1} parent=35 // pred_fallthru
          _
      $region36: #{tpu_custom_call.1} parent=5 // pred_fallthru
        _
      %p1670 = scmp.le.s32.totalorder 2, %s18
      // Predicated region
      $region45: #{tpu_custom_call.1} parent=5 // pred_check
        %p1671 = pneg %p1670
      $region46: #{tpu_custom_call.1} parent=5 // pred_check_branch
        %1673 = sbr.rel (%p1671) target = $region48
      $region47: #{tpu_custom_call.1} parent=5 // pred_region
        %s1674 = ssub.s32 %s18, 2
        // Predicated region
        $region49: #{tpu_custom_call.1} parent=47 // pred_check
          %p1675 = pneg %p146
        $region50: #{tpu_custom_call.1} parent=47 // pred_check_branch
          %1677 = sbr.rel (%p1675) target = $region52
        $region51: #{tpu_custom_call.1} parent=47 // pred_region
          %s1678 = sand.u32 %s131, 1
          %s1679 = scalar_lea.sflag [#allocation3], %s1678
          %s1680 = sand.u32 %s131, 1
          %s1681 = smul.addr %s1680, 8
          %s1682 = scalar_lea.vmem [#allocation2], %s1681
          %1683 = dma.done %s1679, 128
        $region52: #{tpu_custom_call.1} parent=47 // pred_fallthru
          _
        // Predicated region
        $region53: #{tpu_custom_call.1} parent=47 // pred_check
          %p1684 = pneg %p172
        $region54: #{tpu_custom_call.1} parent=47 // pred_check_branch
          %1686 = sbr.rel (%p1684) target = $region56
        $region55: #{tpu_custom_call.1} parent=47 // pred_region
          %s1687 = sand.u32 %s157, 1
          %s1688 = scalar_lea.sflag [#allocation5], %s1687
          %s1689 = sand.u32 %s157, 1
          %s1690 = smul.addr %s1689, 8
          %s1691 = scalar_lea.vmem [#allocation4], %s1690
          %1692 = dma.done %s1688, 128
        $region56: #{tpu_custom_call.1} parent=47 // pred_fallthru
          _
      $region48: #{tpu_custom_call.1} parent=5 // pred_fallthru
        _
    $region6: #{tpu_custom_call.1} parent=1 // loop_footer
      %s22 = sadd.s32 1, %s18
    $region7: #{tpu_custom_call.1} parent=1 // loop_footer_branch
      %17 = sbr.rel target = $region3
    $region8: #{tpu_custom_call.1} parent=1 // loop_exit
      _
    %1693 = vsyncpa [#allocation3], 1
    %s1694 = scalar_lea.sflag [#allocation3], 1
    %1695 = vsyncpa %s1694, 1
    %1696 = vsyncpa [#allocation5], 1
    %s1697 = scalar_lea.sflag [#allocation5], 1
    %1698 = vsyncpa %s1697, 1

</llo_original>
